<compile_context>
chip_gen: v7x
topology: tpu7x:2x2x1
jax: 0.10.0
libtpu: 0.0.40
codegen_flags: <defaults>
</compile_context>

<pallas_src>
import functools

import jax
import jax.numpy as jnp
from jax.experimental import pallas as pl
from jax.experimental.pallas import tpu as pltpu

STEPS = 2  # GraphLayer(steps=2)


# ----------------------------------------------------------------------------
# Pallas kernel: GraphLayer forward for a block of BLK_B graphs
# ----------------------------------------------------------------------------
def _graphlayer_kernel(
    x_ref,       # (BLK_B, S, D_in)  node features
    sup_ref,     # (BLK_B, S, S)     adjacency / support
    mask_ref,    # (BLK_B, S, 1)     node mask
    enc_w_ref,   # (D_in, H)         encode weight (stored as W^T: in, out)
    enc_b_ref,   # (1, H)
    wa_ref,      # (H, 3H)           fused [z0 | r0 | h0]   (applied to a)
    wx_ref,      # (H, 2H)           fused [z1 | r1]        (applied to x)
    wh1_ref,     # (H, H)            h1                     (applied to r*x)
    bg_ref,      # (1, 3H)           fused gate biases [bz0+bz1 | br0+br1 | bh0+bh1]
    out_ref,     # (BLK_B, S, H)
):
    f32 = jnp.float32
    blk_b, s, d_in = x_ref.shape
    h = enc_w_ref.shape[1]
    n = blk_b * s

    x = x_ref[...].astype(f32).reshape(n, d_in)          # flatten node axis
    sup = sup_ref[...].astype(f32)                       # (blk_b, s, s)
    mask = mask_ref[...].astype(f32).reshape(n, 1)       # (n, 1)

    def sigmoid(v):
        # exp on EUP + approx reciprocal on EUP -> frees VALU slots
        return pl.reciprocal(1.0 + jnp.exp(-v), approx=True)

    def elu(v):
        # ELU(alpha=1); clamp exp arg so the untaken branch stays finite
        return jnp.where(v > 0.0, v, jnp.exp(jnp.minimum(v, 0.0)) - 1.0)

    # ---- encode + ELU + mask (dropout = identity in eval mode) --------------
    # TODO(synk): dropout omitted (inference / eval-mode semantics).
    enc = jnp.dot(x, enc_w_ref[...], preferred_element_type=f32) + enc_b_ref[...]
    out = mask * elu(enc)                                # (n, h)

    # ---- hoisted weight / bias reads (outside the STEPS loop) ---------------
    wa = wa_ref[...]                                     # (h, 3h)
    wx = wx_ref[...]                                     # (h, 2h)
    wh1 = wh1_ref[...]                                   # (h, h)
    bz = bg_ref[:, 0:h]                                  # (1, h)
    br = bg_ref[:, h:2 * h]
    bh = bg_ref[:, 2 * h:3 * h]

    # ---- GRU message-passing steps (static unroll, STEPS is small) ----------
    for _ in range(STEPS):
        # per-graph aggregation: a = support @ out
        a = jnp.einsum(
            "bij,bjh->bih", sup, out.reshape(blk_b, s, h),
            preferred_element_type=f32,
        ).reshape(n, h)

        ga = jnp.dot(a, wa, preferred_element_type=f32)      # (n, 3h)
        gx = jnp.dot(out, wx, preferred_element_type=f32)    # (n, 2h)

        z = sigmoid(ga[:, 0:h] + gx[:, 0:h] + bz)
        r = sigmoid(ga[:, h:2 * h] + gx[:, h:2 * h] + br)
        h1 = jnp.dot(r * out, wh1, preferred_element_type=f32)
        hcand = elu(mask * (ga[:, 2 * h:3 * h] + h1 + bh))
        out = hcand * z + out * (1.0 - z)

    out_ref[...] = out.reshape(blk_b, s, h).astype(out_ref.dtype)


# ----------------------------------------------------------------------------
# Wrapper
# ----------------------------------------------------------------------------
def graph_layer_forward(x, support, mask, params, *, block_graphs=8):
    B, S, D_in = x.shape
    H = params["enc_w"].shape[1]

    # largest divisor of B that is <= block_graphs
    blk = min(block_graphs, B)
    while B % blk != 0:
        blk -= 1
    grid = (B // blk,)

    def _full_spec(shape):
        nd = len(shape)
        return pl.BlockSpec(shape, lambda b, _n=nd: (0,) * _n)

    grid_spec = pltpu.PrefetchScalarGridSpec(
        num_scalar_prefetch=0,
        grid=grid,
        in_specs=[
            pl.BlockSpec((blk, S, D_in), lambda b: (b, 0, 0)),   # x
            pl.BlockSpec((blk, S, S), lambda b: (b, 0, 0)),      # support
            pl.BlockSpec((blk, S, 1), lambda b: (b, 0, 0)),      # mask
            _full_spec(params["enc_w"].shape),
            _full_spec(params["enc_b"].shape),
            _full_spec(params["gru_wa"].shape),
            _full_spec(params["gru_wx"].shape),
            _full_spec(params["gru_wh1"].shape),
            _full_spec(params["gru_bg"].shape),
        ],
        out_specs=pl.BlockSpec((blk, S, H), lambda b: (b, 0, 0)),
    )

    return pl.pallas_call(
        _graphlayer_kernel,
        out_shape=jax.ShapeDtypeStruct((B, S, H), jnp.float32),
        grid_spec=grid_spec,
        compiler_params=pltpu.CompilerParams(
            dimension_semantics=("parallel",),
            vmem_limit_bytes=64 << 20,   # headroom if block_graphs is raised
        ),
    )(
        x,
        support,
        mask,
        params["enc_w"],
        params["enc_b"],
        params["gru_wa"],
        params["gru_wx"],
        params["gru_wh1"],
        params["gru_bg"],
    )


# ----------------------------------------------------------------------------
# Deterministic parameters (stand-in for nn.init.normal_(std=0.1)); weights are
# stored pre-transposed as (in, out), GRU gates fused as described above.
# ----------------------------------------------------------------------------
def init_params(key, d_in, hidden):
    keys = jax.random.split(key, 14)
    nrm = lambda k, shp: (0.1 * jax.random.normal(k, shp)).astype(jnp.float32)
    z0, z1 = nrm(keys[0], (hidden, hidden)), nrm(keys[1], (hidden, hidden))
    r0, r1 = nrm(keys[2], (hidden, hidden)), nrm(keys[3], (hidden, hidden))
    h0, h1 = nrm(keys[4], (hidden, hidden)), nrm(keys[5], (hidden, hidden))
    bz0, bz1 = nrm(keys[6], (hidden,)), nrm(keys[7], (hidden,))
    br0, br1 = nrm(keys[8], (hidden,)), nrm(keys[9], (hidden,))
    bh0, bh1 = nrm(keys[10], (hidden,)), nrm(keys[11], (hidden,))
    return {
        "enc_w": nrm(keys[12], (d_in, hidden)),
        "enc_b": nrm(keys[13], (1, hidden)),
        "gru_wa": jnp.concatenate([z0, r0, h0], axis=1),          # (H, 3H)
        "gru_wx": jnp.concatenate([z1, r1], axis=1),              # (H, 2H)
        "gru_wh1": h1,                                            # (H, H)
        "gru_bg": jnp.concatenate([bz0 + bz1, br0 + br1, bh0 + bh1])[None, :],
    }


# ----------------------------------------------------------------------------
# Pure-JAX reference (same math, exact reciprocal) for a correctness check
# ----------------------------------------------------------------------------
def _graphlayer_ref(x, support, mask, p):
    H = p["enc_w"].shape[1]
    sigmoid = lambda v: 1.0 / (1.0 + jnp.exp(-v))
    elu = lambda v: jnp.where(v > 0.0, v, jnp.exp(jnp.minimum(v, 0.0)) - 1.0)
    out = mask * elu(x @ p["enc_w"] + p["enc_b"])
    for _ in range(STEPS):
        a = jnp.einsum("bij,bjh->bih", support, out)
        ga = a @ p["gru_wa"]
        gx = out @ p["gru_wx"]
        z = sigmoid(ga[..., 0:H] + gx[..., 0:H] + p["gru_bg"][:, 0:H])
        r = sigmoid(ga[..., H:2 * H] + gx[..., H:2 * H] + p["gru_bg"][:, H:2 * H])
        h1 = (r * out) @ p["gru_wh1"]
        hc = elu(mask * (ga[..., 2 * H:3 * H] + h1 + p["gru_bg"][:, 2 * H:3 * H]))
        out = hc * z + out * (1.0 - z)
    return out


# ----------------------------------------------------------------------------
# Main
# ----------------------------------------------------------------------------
if __name__ == "__main__":
    B, S = 8, 8          # graphs, nodes per graph
    D_IN = 128           # input feature dim (lane-dense)
    HIDDEN = 128         # GraphLayer output dim (lane-dense)

    key = jax.random.PRNGKey(0)
    k_x, k_sup, k_par = jax.random.split(key, 3)

    x = jax.random.normal(k_x, (B, S, D_IN), dtype=jnp.float32)
    support = jax.nn.softmax(
        jax.random.normal(k_sup, (B, S, S), dtype=jnp.float32), axis=-1
    )
    mask = jnp.concatenate(
        [jnp.ones((B, S - 2, 1)), jnp.zeros((B, 2, 1))], axis=1
    ).astype(jnp.float32)                                  # last 2 nodes padded

    params = init_params(k_par, D_IN, HIDDEN)

    out = graph_layer_forward(x, support, mask, params, block_graphs=4)
    out = jax.block_until_ready(out)
    assert out.shape == (B, S, HIDDEN)
    assert bool(jnp.all(jnp.isfinite(out)))

    ref = _graphlayer_ref(x, support, mask, params)
    max_err = float(jnp.max(jnp.abs(out - ref)))
    assert max_err < 1e-2, f"mismatch vs reference: {max_err}"
    print("KERNEL_OK")
</pallas_src>

<mosaic_0001>
module attributes {stable_mosaic.version = 11 : i64} {
  func.func @_graphlayer_kernel(%arg0: i32, %arg1: memref<4x8x128xf32, #tpu.memory_space<vmem>>, %arg2: memref<4x8x8xf32, #tpu.memory_space<vmem>>, %arg3: memref<4x8x1xf32, #tpu.memory_space<vmem>>, %arg4: memref<128x128xf32, #tpu.memory_space<vmem>>, %arg5: memref<1x128xf32, #tpu.memory_space<vmem>>, %arg6: memref<128x384xf32, #tpu.memory_space<vmem>>, %arg7: memref<128x256xf32, #tpu.memory_space<vmem>>, %arg8: memref<128x128xf32, #tpu.memory_space<vmem>>, %arg9: memref<1x384xf32, #tpu.memory_space<vmem>>, %arg10: memref<4x8x128xf32, #tpu.memory_space<vmem>>) attributes {dimension_semantics = [#tpu.dimension_semantics<parallel>], iteration_bounds = array<i64: 2>, scalar_prefetch = 0 : i64, scratch_operands = 0 : i64, tpu.core_type = #tpu.core_type<tc>, window_params = [{transform_indices = @transform_0, window_bounds = array<i64: 4, 8, 128>}, {transform_indices = @transform_1, window_bounds = array<i64: 4, 8, 8>}, {transform_indices = @transform_2, window_bounds = array<i64: 4, 8, 1>}, {pipeline_mode = #tpu.pipeline_mode<synchronous>, transform_indices = @transform_3, window_bounds = array<i64: 128, 128>}, {pipeline_mode = #tpu.pipeline_mode<synchronous>, transform_indices = @transform_4, window_bounds = array<i64: 1, 128>}, {pipeline_mode = #tpu.pipeline_mode<synchronous>, transform_indices = @transform_5, window_bounds = array<i64: 128, 384>}, {pipeline_mode = #tpu.pipeline_mode<synchronous>, transform_indices = @transform_6, window_bounds = array<i64: 128, 256>}, {pipeline_mode = #tpu.pipeline_mode<synchronous>, transform_indices = @transform_7, window_bounds = array<i64: 128, 128>}, {pipeline_mode = #tpu.pipeline_mode<synchronous>, transform_indices = @transform_8, window_bounds = array<i64: 1, 384>}, {transform_indices = @transform_9, window_bounds = array<i64: 4, 8, 128>}]} {
    %c0 = arith.constant 0 : index
    %c0_0 = arith.constant 0 : index
    %c0_1 = arith.constant 0 : index
    %0 = vector.load %arg1[%c0, %c0_0, %c0_1] : memref<4x8x128xf32, #tpu.memory_space<vmem>>, vector<4x8x128xf32>
    %1 = vector.shape_cast %0 : vector<4x8x128xf32> to vector<32x128xf32>
    %c0_2 = arith.constant 0 : index
    %c0_3 = arith.constant 0 : index
    %c0_4 = arith.constant 0 : index
    %2 = vector.load %arg2[%c0_2, %c0_3, %c0_4] : memref<4x8x8xf32, #tpu.memory_space<vmem>>, vector<4x8x8xf32>
    %c0_5 = arith.constant 0 : index
    %c0_6 = arith.constant 0 : index
    %c0_7 = arith.constant 0 : index
    %3 = vector.load %arg3[%c0_5, %c0_6, %c0_7] : memref<4x8x1xf32, #tpu.memory_space<vmem>>, vector<4x8x1xf32>
    %4 = vector.shape_cast %3 : vector<4x8x1xf32> to vector<32x1xf32>
    %c0_8 = arith.constant 0 : index
    %c0_9 = arith.constant 0 : index
    %5 = vector.load %arg4[%c0_8, %c0_9] : memref<128x128xf32, #tpu.memory_space<vmem>>, vector<128x128xf32>
    %cst = arith.constant dense<0.000000e+00> : vector<32x128xf32>
    %6 = tpu.matmul %1, %5, %cst {dimension_numbers = #tpu.dot_dimension_numbers<[1], [0], [0], [1], [0, 0, 1, 1], [], []>} : vector<32x128xf32>, vector<128x128xf32>, vector<32x128xf32> -> vector<32x128xf32>
    %c0_10 = arith.constant 0 : index
    %c0_11 = arith.constant 0 : index
    %7 = vector.load %arg5[%c0_10, %c0_11] : memref<1x128xf32, #tpu.memory_space<vmem>>, vector<1x128xf32>
    %8 = vector.broadcast %7 : vector<1x128xf32> to vector<32x128xf32>
    %9 = arith.addf %6, %8 : vector<32x128xf32>
    %cst_12 = arith.constant 0.000000e+00 : f32
    %10 = vector.broadcast %cst_12 : f32 to vector<32x128xf32>
    %11 = arith.cmpf ogt, %9, %10 : vector<32x128xf32>
    %cst_13 = arith.constant 0.000000e+00 : f32
    %12 = vector.broadcast %cst_13 : f32 to vector<32x128xf32>
    %13 = arith.minimumf %9, %12 : vector<32x128xf32>
    %14 = math.exp %13 : vector<32x128xf32>
    %cst_14 = arith.constant 1.000000e+00 : f32
    %15 = vector.broadcast %cst_14 : f32 to vector<32x128xf32>
    %16 = arith.subf %14, %15 : vector<32x128xf32>
    %17 = arith.select %11, %9, %16 : vector<32x128xi1>, vector<32x128xf32>
    %18 = vector.broadcast %4 : vector<32x1xf32> to vector<32x128xf32>
    %19 = arith.mulf %18, %17 : vector<32x128xf32>
    %c0_15 = arith.constant 0 : index
    %c0_16 = arith.constant 0 : index
    %20 = vector.load %arg6[%c0_15, %c0_16] : memref<128x384xf32, #tpu.memory_space<vmem>>, vector<128x384xf32>
    %c0_17 = arith.constant 0 : index
    %c0_18 = arith.constant 0 : index
    %21 = vector.load %arg7[%c0_17, %c0_18] : memref<128x256xf32, #tpu.memory_space<vmem>>, vector<128x256xf32>
    %c0_19 = arith.constant 0 : index
    %c0_20 = arith.constant 0 : index
    %22 = vector.load %arg8[%c0_19, %c0_20] : memref<128x128xf32, #tpu.memory_space<vmem>>, vector<128x128xf32>
    %c0_21 = arith.constant 0 : index
    %c0_22 = arith.constant 0 : index
    %23 = vector.load %arg9[%c0_21, %c0_22] : memref<1x384xf32, #tpu.memory_space<vmem>>, vector<1x128xf32>
    %c0_23 = arith.constant 0 : index
    %c128 = arith.constant 128 : index
    %24 = vector.load %arg9[%c0_23, %c128] : memref<1x384xf32, #tpu.memory_space<vmem>>, vector<1x128xf32>
    %c0_24 = arith.constant 0 : index
    %c256 = arith.constant 256 : index
    %25 = vector.load %arg9[%c0_24, %c256] : memref<1x384xf32, #tpu.memory_space<vmem>>, vector<1x128xf32>
    %26 = vector.shape_cast %19 : vector<32x128xf32> to vector<4x8x128xf32>
    "tpu.trace_start"() <{level = 10 : i32, message = "bij,bjh->bih"}> : () -> ()
    %cst_25 = arith.constant dense<0.000000e+00> : vector<4x8x128xf32>
    %27 = tpu.matmul %2, %26, %cst_25 {dimension_numbers = #tpu.dot_dimension_numbers<[2], [1], [1], [2], [0, 0, 0, 1, 1, 2], [0], [0]>} : vector<4x8x8xf32>, vector<4x8x128xf32>, vector<4x8x128xf32> -> vector<4x8x128xf32>
    "tpu.trace_stop"() : () -> ()
    %28 = vector.shape_cast %27 : vector<4x8x128xf32> to vector<32x128xf32>
    %cst_26 = arith.constant dense<0.000000e+00> : vector<32x384xf32>
    %29 = tpu.matmul %28, %20, %cst_26 {dimension_numbers = #tpu.dot_dimension_numbers<[1], [0], [0], [1], [0, 0, 1, 1], [], []>} : vector<32x128xf32>, vector<128x384xf32>, vector<32x384xf32> -> vector<32x384xf32>
    %cst_27 = arith.constant dense<0.000000e+00> : vector<32x256xf32>
    %30 = tpu.matmul %19, %21, %cst_27 {dimension_numbers = #tpu.dot_dimension_numbers<[1], [0], [0], [1], [0, 0, 1, 1], [], []>} : vector<32x128xf32>, vector<128x256xf32>, vector<32x256xf32> -> vector<32x256xf32>
    %31 = vector.extract_strided_slice %29 {offsets = [0, 0], sizes = [32, 128], strides = [1, 1]} : vector<32x384xf32> to vector<32x128xf32>
    %32 = vector.extract_strided_slice %30 {offsets = [0, 0], sizes = [32, 128], strides = [1, 1]} : vector<32x256xf32> to vector<32x128xf32>
    %33 = arith.addf %31, %32 : vector<32x128xf32>
    %34 = vector.broadcast %23 : vector<1x128xf32> to vector<32x128xf32>
    %35 = arith.addf %33, %34 : vector<32x128xf32>
    %cst_28 = arith.constant 0.000000e+00 : f32
    %36 = vector.broadcast %cst_28 : f32 to vector<32x128xf32>
    %37 = arith.subf %36, %35 : vector<32x128xf32>
    %38 = math.exp %37 : vector<32x128xf32>
    %cst_29 = arith.constant 1.000000e+00 : f32
    %39 = vector.broadcast %cst_29 : f32 to vector<32x128xf32>
    %40 = arith.addf %39, %38 : vector<32x128xf32>
    %41 = tpu.reciprocal %40 {approx = true} : vector<32x128xf32> -> vector<32x128xf32>
    %42 = vector.extract_strided_slice %29 {offsets = [0, 128], sizes = [32, 128], strides = [1, 1]} : vector<32x384xf32> to vector<32x128xf32>
    %43 = vector.extract_strided_slice %30 {offsets = [0, 128], sizes = [32, 128], strides = [1, 1]} : vector<32x256xf32> to vector<32x128xf32>
    %44 = arith.addf %42, %43 : vector<32x128xf32>
    %45 = vector.broadcast %24 : vector<1x128xf32> to vector<32x128xf32>
    %46 = arith.addf %44, %45 : vector<32x128xf32>
    %cst_30 = arith.constant 0.000000e+00 : f32
    %47 = vector.broadcast %cst_30 : f32 to vector<32x128xf32>
    %48 = arith.subf %47, %46 : vector<32x128xf32>
    %49 = math.exp %48 : vector<32x128xf32>
    %cst_31 = arith.constant 1.000000e+00 : f32
    %50 = vector.broadcast %cst_31 : f32 to vector<32x128xf32>
    %51 = arith.addf %50, %49 : vector<32x128xf32>
    %52 = tpu.reciprocal %51 {approx = true} : vector<32x128xf32> -> vector<32x128xf32>
    %53 = arith.mulf %52, %19 : vector<32x128xf32>
    %cst_32 = arith.constant dense<0.000000e+00> : vector<32x128xf32>
    %54 = tpu.matmul %53, %22, %cst_32 {dimension_numbers = #tpu.dot_dimension_numbers<[1], [0], [0], [1], [0, 0, 1, 1], [], []>} : vector<32x128xf32>, vector<128x128xf32>, vector<32x128xf32> -> vector<32x128xf32>
    %55 = vector.extract_strided_slice %29 {offsets = [0, 256], sizes = [32, 128], strides = [1, 1]} : vector<32x384xf32> to vector<32x128xf32>
    %56 = arith.addf %55, %54 : vector<32x128xf32>
    %57 = vector.broadcast %25 : vector<1x128xf32> to vector<32x128xf32>
    %58 = arith.addf %56, %57 : vector<32x128xf32>
    %59 = vector.broadcast %4 : vector<32x1xf32> to vector<32x128xf32>
    %60 = arith.mulf %59, %58 : vector<32x128xf32>
    %cst_33 = arith.constant 0.000000e+00 : f32
    %61 = vector.broadcast %cst_33 : f32 to vector<32x128xf32>
    %62 = arith.cmpf ogt, %60, %61 : vector<32x128xf32>
    %cst_34 = arith.constant 0.000000e+00 : f32
    %63 = vector.broadcast %cst_34 : f32 to vector<32x128xf32>
    %64 = arith.minimumf %60, %63 : vector<32x128xf32>
    %65 = math.exp %64 : vector<32x128xf32>
    %cst_35 = arith.constant 1.000000e+00 : f32
    %66 = vector.broadcast %cst_35 : f32 to vector<32x128xf32>
    %67 = arith.subf %65, %66 : vector<32x128xf32>
    %68 = arith.select %62, %60, %67 : vector<32x128xi1>, vector<32x128xf32>
    %69 = arith.mulf %68, %41 : vector<32x128xf32>
    %cst_36 = arith.constant 1.000000e+00 : f32
    %70 = vector.broadcast %cst_36 : f32 to vector<32x128xf32>
    %71 = arith.subf %70, %41 : vector<32x128xf32>
    %72 = arith.mulf %19, %71 : vector<32x128xf32>
    %73 = arith.addf %69, %72 : vector<32x128xf32>
    %74 = vector.shape_cast %73 : vector<32x128xf32> to vector<4x8x128xf32>
    "tpu.trace_start"() <{level = 10 : i32, message = "bij,bjh->bih"}> : () -> ()
    %cst_37 = arith.constant dense<0.000000e+00> : vector<4x8x128xf32>
    %75 = tpu.matmul %2, %74, %cst_37 {dimension_numbers = #tpu.dot_dimension_numbers<[2], [1], [1], [2], [0, 0, 0, 1, 1, 2], [0], [0]>} : vector<4x8x8xf32>, vector<4x8x128xf32>, vector<4x8x128xf32> -> vector<4x8x128xf32>
    "tpu.trace_stop"() : () -> ()
    %76 = vector.shape_cast %75 : vector<4x8x128xf32> to vector<32x128xf32>
    %cst_38 = arith.constant dense<0.000000e+00> : vector<32x384xf32>
    %77 = tpu.matmul %76, %20, %cst_38 {dimension_numbers = #tpu.dot_dimension_numbers<[1], [0], [0], [1], [0, 0, 1, 1], [], []>} : vector<32x128xf32>, vector<128x384xf32>, vector<32x384xf32> -> vector<32x384xf32>
    %cst_39 = arith.constant dense<0.000000e+00> : vector<32x256xf32>
    %78 = tpu.matmul %73, %21, %cst_39 {dimension_numbers = #tpu.dot_dimension_numbers<[1], [0], [0], [1], [0, 0, 1, 1], [], []>} : vector<32x128xf32>, vector<128x256xf32>, vector<32x256xf32> -> vector<32x256xf32>
    %79 = vector.extract_strided_slice %77 {offsets = [0, 0], sizes = [32, 128], strides = [1, 1]} : vector<32x384xf32> to vector<32x128xf32>
    %80 = vector.extract_strided_slice %78 {offsets = [0, 0], sizes = [32, 128], strides = [1, 1]} : vector<32x256xf32> to vector<32x128xf32>
    %81 = arith.addf %79, %80 : vector<32x128xf32>
    %82 = vector.broadcast %23 : vector<1x128xf32> to vector<32x128xf32>
    %83 = arith.addf %81, %82 : vector<32x128xf32>
    %cst_40 = arith.constant 0.000000e+00 : f32
    %84 = vector.broadcast %cst_40 : f32 to vector<32x128xf32>
    %85 = arith.subf %84, %83 : vector<32x128xf32>
    %86 = math.exp %85 : vector<32x128xf32>
    %cst_41 = arith.constant 1.000000e+00 : f32
    %87 = vector.broadcast %cst_41 : f32 to vector<32x128xf32>
    %88 = arith.addf %87, %86 : vector<32x128xf32>
    %89 = tpu.reciprocal %88 {approx = true} : vector<32x128xf32> -> vector<32x128xf32>
    %90 = vector.extract_strided_slice %77 {offsets = [0, 128], sizes = [32, 128], strides = [1, 1]} : vector<32x384xf32> to vector<32x128xf32>
    %91 = vector.extract_strided_slice %78 {offsets = [0, 128], sizes = [32, 128], strides = [1, 1]} : vector<32x256xf32> to vector<32x128xf32>
    %92 = arith.addf %90, %91 : vector<32x128xf32>
    %93 = vector.broadcast %24 : vector<1x128xf32> to vector<32x128xf32>
    %94 = arith.addf %92, %93 : vector<32x128xf32>
    %cst_42 = arith.constant 0.000000e+00 : f32
    %95 = vector.broadcast %cst_42 : f32 to vector<32x128xf32>
    %96 = arith.subf %95, %94 : vector<32x128xf32>
    %97 = math.exp %96 : vector<32x128xf32>
    %cst_43 = arith.constant 1.000000e+00 : f32
    %98 = vector.broadcast %cst_43 : f32 to vector<32x128xf32>
    %99 = arith.addf %98, %97 : vector<32x128xf32>
    %100 = tpu.reciprocal %99 {approx = true} : vector<32x128xf32> -> vector<32x128xf32>
    %101 = arith.mulf %100, %73 : vector<32x128xf32>
    %cst_44 = arith.constant dense<0.000000e+00> : vector<32x128xf32>
    %102 = tpu.matmul %101, %22, %cst_44 {dimension_numbers = #tpu.dot_dimension_numbers<[1], [0], [0], [1], [0, 0, 1, 1], [], []>} : vector<32x128xf32>, vector<128x128xf32>, vector<32x128xf32> -> vector<32x128xf32>
    %103 = vector.extract_strided_slice %77 {offsets = [0, 256], sizes = [32, 128], strides = [1, 1]} : vector<32x384xf32> to vector<32x128xf32>
    %104 = arith.addf %103, %102 : vector<32x128xf32>
    %105 = vector.broadcast %25 : vector<1x128xf32> to vector<32x128xf32>
    %106 = arith.addf %104, %105 : vector<32x128xf32>
    %107 = vector.broadcast %4 : vector<32x1xf32> to vector<32x128xf32>
    %108 = arith.mulf %107, %106 : vector<32x128xf32>
    %cst_45 = arith.constant 0.000000e+00 : f32
    %109 = vector.broadcast %cst_45 : f32 to vector<32x128xf32>
    %110 = arith.cmpf ogt, %108, %109 : vector<32x128xf32>
    %cst_46 = arith.constant 0.000000e+00 : f32
    %111 = vector.broadcast %cst_46 : f32 to vector<32x128xf32>
    %112 = arith.minimumf %108, %111 : vector<32x128xf32>
    %113 = math.exp %112 : vector<32x128xf32>
    %cst_47 = arith.constant 1.000000e+00 : f32
    %114 = vector.broadcast %cst_47 : f32 to vector<32x128xf32>
    %115 = arith.subf %113, %114 : vector<32x128xf32>
    %116 = arith.select %110, %108, %115 : vector<32x128xi1>, vector<32x128xf32>
    %117 = arith.mulf %116, %89 : vector<32x128xf32>
    %cst_48 = arith.constant 1.000000e+00 : f32
    %118 = vector.broadcast %cst_48 : f32 to vector<32x128xf32>
    %119 = arith.subf %118, %89 : vector<32x128xf32>
    %120 = arith.mulf %73, %119 : vector<32x128xf32>
    %121 = arith.addf %117, %120 : vector<32x128xf32>
    %122 = vector.shape_cast %121 : vector<32x128xf32> to vector<4x8x128xf32>
    %c0_49 = arith.constant 0 : index
    %c0_50 = arith.constant 0 : index
    %c0_51 = arith.constant 0 : index
    %123 = vector.load %arg10[%c0_49, %c0_50, %c0_51] : memref<4x8x128xf32, #tpu.memory_space<vmem>>, vector<4x8x128xf32>
    tpu.vector_store %arg10[%c0_49, %c0_50, %c0_51], %122 {strides = array<i32>} : memref<4x8x128xf32, #tpu.memory_space<vmem>>, vector<4x8x128xf32>,
    return
  }
  func.func @transform_0(%arg0: i32) -> (i32, i32, i32) {
    %c0_i32 = arith.constant 0 : i32
    %c0_i32_0 = arith.constant 0 : i32
    %c0_i32_1 = arith.constant 0 : i32
    return %arg0, %c0_i32, %c0_i32_0 : i32, i32, i32
  }
  func.func @transform_1(%arg0: i32) -> (i32, i32, i32) {
    %c0_i32 = arith.constant 0 : i32
    %c0_i32_0 = arith.constant 0 : i32
    %c0_i32_1 = arith.constant 0 : i32
    return %arg0, %c0_i32, %c0_i32_0 : i32, i32, i32
  }
  func.func @transform_2(%arg0: i32) -> (i32, i32, i32) {
    %c0_i32 = arith.constant 0 : i32
    %c0_i32_0 = arith.constant 0 : i32
    %c0_i32_1 = arith.constant 0 : i32
    return %arg0, %c0_i32, %c0_i32_0 : i32, i32, i32
  }
  func.func @transform_3(%arg0: i32) -> (i32, i32) {
    %c0_i32 = arith.constant 0 : i32
    %c0_i32_0 = arith.constant 0 : i32
    %c0_i32_1 = arith.constant 0 : i32
    return %c0_i32, %c0_i32_0 : i32, i32
  }
  func.func @transform_4(%arg0: i32) -> (i32, i32) {
    %c0_i32 = arith.constant 0 : i32
    %c0_i32_0 = arith.constant 0 : i32
    %c0_i32_1 = arith.constant 0 : i32
    return %c0_i32, %c0_i32_0 : i32, i32
  }
  func.func @transform_5(%arg0: i32) -> (i32, i32) {
    %c0_i32 = arith.constant 0 : i32
    %c0_i32_0 = arith.constant 0 : i32
    %c0_i32_1 = arith.constant 0 : i32
    return %c0_i32, %c0_i32_0 : i32, i32
  }
  func.func @transform_6(%arg0: i32) -> (i32, i32) {
    %c0_i32 = arith.constant 0 : i32
    %c0_i32_0 = arith.constant 0 : i32
    %c0_i32_1 = arith.constant 0 : i32
    return %c0_i32, %c0_i32_0 : i32, i32
  }
  func.func @transform_7(%arg0: i32) -> (i32, i32) {
    %c0_i32 = arith.constant 0 : i32
    %c0_i32_0 = arith.constant 0 : i32
    %c0_i32_1 = arith.constant 0 : i32
    return %c0_i32, %c0_i32_0 : i32, i32
  }
  func.func @transform_8(%arg0: i32) -> (i32, i32) {
    %c0_i32 = arith.constant 0 : i32
    %c0_i32_0 = arith.constant 0 : i32
    %c0_i32_1 = arith.constant 0 : i32
    return %c0_i32, %c0_i32_0 : i32, i32
  }
  func.func @transform_9(%arg0: i32) -> (i32, i32, i32) {
    %c0_i32 = arith.constant 0 : i32
    %c0_i32_0 = arith.constant 0 : i32
    %c0_i32_1 = arith.constant 0 : i32
    return %arg0, %c0_i32, %c0_i32_0 : i32, i32, i32
  }
}

</mosaic_0001>

<llo_original>
// kernel: tpu_custom_call.1
$region0: #{tpu_custom_call.1}
  #allocation0 [shape = 'u32[]', space=smem, size = 0x4, offset = 0x4, fixed_abs, tag = 'smem constant byte address 0x4 - core index']
  #allocation1 [shape = 'u32[144,128]{1,0:T(1,128)}', space=vmem, size = 0x12000, scoped, tag = 'internal scratch']
  %s0 = inlined_call_operand.hbm [shape: f32[8,8,128], index: 0, kind: input, shape index: {}]
  %s1 = inlined_call_operand.hbm [shape: f32[8,8,8], index: 1, kind: input, shape index: {}]
  %s2 = inlined_call_operand.hbm [shape: f32[8,8,1], index: 2, kind: input, shape index: {}]
  %s3 = inlined_call_operand.hbm [shape: f32[128,128], index: 3, kind: input, shape index: {}]
  %s4 = inlined_call_operand.hbm [shape: f32[1,128], index: 4, kind: input, shape index: {}]
  %s5 = inlined_call_operand.hbm [shape: f32[128,384], index: 5, kind: input, shape index: {}]
  %s6 = inlined_call_operand.hbm [shape: f32[128,256], index: 6, kind: input, shape index: {}]
  %s7 = inlined_call_operand.hbm [shape: f32[128,128], index: 7, kind: input, shape index: {}]
  %s8 = inlined_call_operand.hbm [shape: f32[1,384], index: 8, kind: input, shape index: {}]
  %s9 = inlined_call_operand.hbm [shape: f32[8,8,128], index: 9, kind: output, shape index: {}]
  %s10 = sld [smem:[#allocation0]]
  $region105: #{tpu_custom_call.1} parent=0
    _
  %s12 = ssub.s32 1, %s10
  %s13 = scalar_select 0, %s12, %s10
  $region1: #{tpu_custom_call.1} parent=0
    #allocation2 [shape = 'u8[32768]{0}', space=vmem, size = 0x8000, scoped, tag = 'input window, operand 0']
    #allocation3 [shape = 's32[2]{0}', space=sflag, size = 0x8, scoped, tag = 'scoped memory for tpu_custom_call.1']
    #allocation4 [shape = 's32[2]{0}', space=sflag, size = 0x8, scoped, tag = 'scoped memory for tpu_custom_call.1']
    #allocation5 [shape = 'u8[32768]{0}', space=vmem, size = 0x8000, scoped, tag = 'input window, operand 1']
    #allocation6 [shape = 's32[2]{0}', space=sflag, size = 0x8, scoped, tag = 'scoped memory for tpu_custom_call.1']
    #allocation7 [shape = 'u8[32768]{0}', space=vmem, size = 0x8000, scoped, tag = 'input window, operand 2']
    #allocation8 [shape = 'u8[65536]{0}', space=vmem, size = 0x10000, scoped, tag = 'input window, operand 3, single buffered']
    #allocation9 [shape = 's32[1]{0}', space=sflag, size = 0x4, scoped, tag = 'scoped memory for tpu_custom_call.1']
    #allocation10 [shape = 'u8[512]{0}', space=vmem, size = 0x400, scoped, tag = 'input window, operand 4, single buffered']
    #allocation11 [shape = 'u8[196608]{0}', space=vmem, size = 0x30000, scoped, tag = 'input window, operand 5, single buffered']
    #allocation12 [shape = 's32[1]{0}', space=sflag, size = 0x4, scoped, tag = 'scoped memory for tpu_custom_call.1']
    #allocation13 [shape = 'u8[131072]{0}', space=vmem, size = 0x20000, scoped, tag = 'input window, operand 6, single buffered']
    #allocation14 [shape = 'u8[65536]{0}', space=vmem, size = 0x10000, scoped, tag = 'input window, operand 7, single buffered']
    #allocation15 [shape = 's32[1]{0}', space=sflag, size = 0x4, scoped, tag = 'scoped memory for tpu_custom_call.1']
    #allocation16 [shape = 'u8[1536]{0}', space=vmem, size = 0x800, scoped, tag = 'input window, operand 8, single buffered']
    #allocation17 [shape = 'u8[32768]{0}', space=vmem, size = 0x8000, scoped, tag = 'output window, operand 0']
    %14 = vsyncpa [#allocation3], 0
    %s15 = scalar_lea.sflag [#allocation3], 1
    %16 = vsyncpa %s15, 0
    %17 = vsyncpa [#allocation6], 0
    %s18 = scalar_lea.sflag [#allocation6], 1
    %19 = vsyncpa %s18, 0
    %20 = vsyncpa [#allocation9], 0
    %21 = vsyncpa [#allocation12], 0
    %22 = vsyncpa [#allocation15], 0
    %23 = vsyncpa [#allocation4], 0
    %s24 = scalar_lea.sflag [#allocation4], 1
    %25 = vsyncpa %s24, 0
    loop: start=0, step=1, limit=4
    $region2: #{tpu_custom_call.1} parent=1 // loop_pre_header
      _
    $region3: #{tpu_custom_call.1} parent=1 // loop_header
      %s27 = sphi 0, %s31
      %p28 = scmp.ge.s32.totalorder %s27, 4
      %s37 = sphi 0, %s39
      %s40 = sphi 0, %s37
      %s41 = sphi 0, %s40
      %s57 = sphi 0, %s41
      %s63 = sphi 0, %s65
      %s66 = sphi 0, %s63
      %s67 = sphi 0, %s66
      %s83 = sphi 0, %s67
      %s89 = sphi 0, %s91
      %s92 = sphi 0, %s89
      %s93 = sphi 0, %s92
      %s109 = sphi 0, %s93
      %s113 = sphi 0, %s113
      %s115 = sphi 0, %s113
      %s116 = sphi 0, %s115
      %s130 = sphi 0, %s116
      %s134 = sphi 0, %s134
      %s136 = sphi 0, %s134
      %s137 = sphi 0, %s136
      %s151 = sphi 0, %s137
      %s155 = sphi 0, %s155
      %s157 = sphi 0, %s155
      %s158 = sphi 0, %s157
      %s172 = sphi 0, %s158
      %s176 = sphi 0, %s176
      %s178 = sphi 0, %s176
      %s179 = sphi 0, %s178
      %s193 = sphi 0, %s179
      %s197 = sphi 0, %s197
      %s199 = sphi 0, %s197
      %s200 = sphi 0, %s199
      %s214 = sphi 0, %s200
      %s218 = sphi 0, %s218
      %s220 = sphi 0, %s218
      %s221 = sphi 0, %s220
      %s235 = sphi 0, %s221
      %s241 = sphi 0, %s243
      %s244 = sphi 0, %s241
      %s245 = sphi 0, %s244
      %s261 = sphi 0, %s245
    $region4: #{tpu_custom_call.1} parent=1 // loop_header_branch
      %30 = sbr.rel (%p28) target = $region8
    $region5: #{tpu_custom_call.1} parent=1 // loop_body
      %s32 = ssub.s32 %s27, 1
      %s33 = ssub.s32 %s27, 2
      %s34 = sadd.s32 %s27, 1
      %s35 = ssub.s32 %s27, %s34
      %p36 = scmp.eq.s32.totalorder %s35, 0
      %s38 = sadd.s32 %s37, 1
      %s39 = scalar_select %p36, %s37, %s38
      %p42 = pneg %p36
      %p43 = scmp.eq.s32.totalorder %s27, 1
      %p44 = por %p42, %p43
      %p45 = scmp.ne.s32.totalorder %s37, %s40
      %p46 = scmp.eq.s32.totalorder %s27, 0
      %p47 = por %p45, %p46
      %p48 = scmp.ne.s32.totalorder %s37, %s40
      %p49 = scmp.eq.s32.totalorder %s32, 1
      %p50 = por %p48, %p49
      %p51 = scmp.ne.s32.totalorder %s40, %s41
      %p52 = scmp.eq.s32.totalorder %s32, 0
      %p53 = por %p51, %p52
      %p54 = scmp.ne.s32.totalorder %s40, %s41
      %p55 = scmp.eq.s32.totalorder %s33, 1
      %p56 = por %p54, %p55
      %p58 = scmp.ne.s32.totalorder %s41, %s57
      %p59 = scmp.eq.s32.totalorder %s33, 0
      %p60 = por %p58, %p59
      %s61 = ssub.s32 %s27, %s34
      %p62 = scmp.eq.s32.totalorder %s61, 0
      %s64 = sadd.s32 %s63, 1
      %s65 = scalar_select %p62, %s63, %s64
      %p68 = pneg %p62
      %p69 = scmp.eq.s32.totalorder %s27, 1
      %p70 = por %p68, %p69
      %p71 = scmp.ne.s32.totalorder %s63, %s66
      %p72 = scmp.eq.s32.totalorder %s27, 0
      %p73 = por %p71, %p72
      %p74 = scmp.ne.s32.totalorder %s63, %s66
      %p75 = scmp.eq.s32.totalorder %s32, 1
      %p76 = por %p74, %p75
      %p77 = scmp.ne.s32.totalorder %s66, %s67
      %p78 = scmp.eq.s32.totalorder %s32, 0
      %p79 = por %p77, %p78
      %p80 = scmp.ne.s32.totalorder %s66, %s67
      %p81 = scmp.eq.s32.totalorder %s33, 1
      %p82 = por %p80, %p81
      %p84 = scmp.ne.s32.totalorder %s67, %s83
      %p85 = scmp.eq.s32.totalorder %s33, 0
      %p86 = por %p84, %p85
      %s87 = ssub.s32 %s27, %s34
      %p88 = scmp.eq.s32.totalorder %s87, 0
      %s90 = sadd.s32 %s89, 1
      %s91 = scalar_select %p88, %s89, %s90
      %p94 = pneg %p88
      %p95 = scmp.eq.s32.totalorder %s27, 1
      %p96 = por %p94, %p95
      %p97 = scmp.ne.s32.totalorder %s89, %s92
      %p98 = scmp.eq.s32.totalorder %s27, 0
      %p99 = por %p97, %p98
      %p100 = scmp.ne.s32.totalorder %s89, %s92
      %p101 = scmp.eq.s32.totalorder %s32, 1
      %p102 = por %p100, %p101
      %p103 = scmp.ne.s32.totalorder %s92, %s93
      %p104 = scmp.eq.s32.totalorder %s32, 0
      %p105 = por %p103, %p104
      %p106 = scmp.ne.s32.totalorder %s92, %s93
      %p107 = scmp.eq.s32.totalorder %s33, 1
      %p108 = por %p106, %p107
      %p110 = scmp.ne.s32.totalorder %s93, %s109
      %p111 = scmp.eq.s32.totalorder %s33, 0
      %p112 = por %p110, %p111
      %s114 = sadd.s32 %s113, 1
      %p117 = scmp.eq.s32.totalorder %s27, 1
      %p118 = scmp.ne.s32.totalorder %s113, %s115
      %p119 = scmp.eq.s32.totalorder %s27, 0
      %p120 = por %p118, %p119
      %p121 = scmp.ne.s32.totalorder %s113, %s115
      %p122 = scmp.eq.s32.totalorder %s32, 1
      %p123 = por %p121, %p122
      %p124 = scmp.ne.s32.totalorder %s115, %s116
      %p125 = scmp.eq.s32.totalorder %s32, 0
      %p126 = por %p124, %p125
      %p127 = scmp.ne.s32.totalorder %s115, %s116
      %p128 = scmp.eq.s32.totalorder %s33, 1
      %p129 = por %p127, %p128
      %p131 = scmp.ne.s32.totalorder %s116, %s130
      %p132 = scmp.eq.s32.totalorder %s33, 0
      %p133 = por %p131, %p132
      %s135 = sadd.s32 %s134, 1
      %p138 = scmp.eq.s32.totalorder %s27, 1
      %p139 = scmp.ne.s32.totalorder %s134, %s136
      %p140 = scmp.eq.s32.totalorder %s27, 0
      %p141 = por %p139, %p140
      %p142 = scmp.ne.s32.totalorder %s134, %s136
      %p143 = scmp.eq.s32.totalorder %s32, 1
      %p144 = por %p142, %p143
      %p145 = scmp.ne.s32.totalorder %s136, %s137
      %p146 = scmp.eq.s32.totalorder %s32, 0
      %p147 = por %p145, %p146
      %p148 = scmp.ne.s32.totalorder %s136, %s137
      %p149 = scmp.eq.s32.totalorder %s33, 1
      %p150 = por %p148, %p149
      %p152 = scmp.ne.s32.totalorder %s137, %s151
      %p153 = scmp.eq.s32.totalorder %s33, 0
      %p154 = por %p152, %p153
      %s156 = sadd.s32 %s155, 1
      %p159 = scmp.eq.s32.totalorder %s27, 1
      %p160 = scmp.ne.s32.totalorder %s155, %s157
      %p161 = scmp.eq.s32.totalorder %s27, 0
      %p162 = por %p160, %p161
      %p163 = scmp.ne.s32.totalorder %s155, %s157
      %p164 = scmp.eq.s32.totalorder %s32, 1
      %p165 = por %p163, %p164
      %p166 = scmp.ne.s32.totalorder %s157, %s158
      %p167 = scmp.eq.s32.totalorder %s32, 0
      %p168 = por %p166, %p167
      %p169 = scmp.ne.s32.totalorder %s157, %s158
      %p170 = scmp.eq.s32.totalorder %s33, 1
      %p171 = por %p169, %p170
      %p173 = scmp.ne.s32.totalorder %s158, %s172
      %p174 = scmp.eq.s32.totalorder %s33, 0
      %p175 = por %p173, %p174
      %s177 = sadd.s32 %s176, 1
      %p180 = scmp.eq.s32.totalorder %s27, 1
      %p181 = scmp.ne.s32.totalorder %s176, %s178
      %p182 = scmp.eq.s32.totalorder %s27, 0
      %p183 = por %p181, %p182
      %p184 = scmp.ne.s32.totalorder %s176, %s178
      %p185 = scmp.eq.s32.totalorder %s32, 1
      %p186 = por %p184, %p185
      %p187 = scmp.ne.s32.totalorder %s178, %s179
      %p188 = scmp.eq.s32.totalorder %s32, 0
      %p189 = por %p187, %p188
      %p190 = scmp.ne.s32.totalorder %s178, %s179
      %p191 = scmp.eq.s32.totalorder %s33, 1
      %p192 = por %p190, %p191
      %p194 = scmp.ne.s32.totalorder %s179, %s193
      %p195 = scmp.eq.s32.totalorder %s33, 0
      %p196 = por %p194, %p195
      %s198 = sadd.s32 %s197, 1
      %p201 = scmp.eq.s32.totalorder %s27, 1
      %p202 = scmp.ne.s32.totalorder %s197, %s199
      %p203 = scmp.eq.s32.totalorder %s27, 0
      %p204 = por %p202, %p203
      %p205 = scmp.ne.s32.totalorder %s197, %s199
      %p206 = scmp.eq.s32.totalorder %s32, 1
      %p207 = por %p205, %p206
      %p208 = scmp.ne.s32.totalorder %s199, %s200
      %p209 = scmp.eq.s32.totalorder %s32, 0
      %p210 = por %p208, %p209
      %p211 = scmp.ne.s32.totalorder %s199, %s200
      %p212 = scmp.eq.s32.totalorder %s33, 1
      %p213 = por %p211, %p212
      %p215 = scmp.ne.s32.totalorder %s200, %s214
      %p216 = scmp.eq.s32.totalorder %s33, 0
      %p217 = por %p215, %p216
      %s219 = sadd.s32 %s218, 1
      %p222 = scmp.eq.s32.totalorder %s27, 1
      %p223 = scmp.ne.s32.totalorder %s218, %s220
      %p224 = scmp.eq.s32.totalorder %s27, 0
      %p225 = por %p223, %p224
      %p226 = scmp.ne.s32.totalorder %s218, %s220
      %p227 = scmp.eq.s32.totalorder %s32, 1
      %p228 = por %p226, %p227
      %p229 = scmp.ne.s32.totalorder %s220, %s221
      %p230 = scmp.eq.s32.totalorder %s32, 0
      %p231 = por %p229, %p230
      %p232 = scmp.ne.s32.totalorder %s220, %s221
      %p233 = scmp.eq.s32.totalorder %s33, 1
      %p234 = por %p232, %p233
      %p236 = scmp.ne.s32.totalorder %s221, %s235
      %p237 = scmp.eq.s32.totalorder %s33, 0
      %p238 = por %p236, %p237
      %s239 = ssub.s32 %s27, %s34
      %p240 = scmp.eq.s32.totalorder %s239, 0
      %s242 = sadd.s32 %s241, 1
      %s243 = scalar_select %p240, %s241, %s242
      %p246 = pneg %p240
      %p247 = scmp.eq.s32.totalorder %s27, 1
      %p248 = por %p246, %p247
      %p249 = scmp.ne.s32.totalorder %s241, %s244
      %p250 = scmp.eq.s32.totalorder %s27, 0
      %p251 = por %p249, %p250
      %p252 = scmp.ne.s32.totalorder %s241, %s244
      %p253 = scmp.eq.s32.totalorder %s32, 1
      %p254 = por %p252, %p253
      %p255 = scmp.ne.s32.totalorder %s244, %s245
      %p256 = scmp.eq.s32.totalorder %s32, 0
      %p257 = por %p255, %p256
      %p258 = scmp.ne.s32.totalorder %s244, %s245
      %p259 = scmp.eq.s32.totalorder %s33, 1
      %p260 = por %p258, %p259
      %p262 = scmp.ne.s32.totalorder %s245, %s261
      %p263 = scmp.eq.s32.totalorder %s33, 0
      %p264 = por %p262, %p263
      %p265 = scmp.le.s32.totalorder 1, %s27
      %p266 = scmp.lt.s32.totalorder %s27, 3
      %p267 = pnand %p265, %p266
      %p268 = pneg %p267
      // Predicated region
      $region9: #{tpu_custom_call.1} parent=5 // pred_check
        _
      $region10: #{tpu_custom_call.1} parent=5 // pred_check_branch
        %270 = sbr.rel (%p267) target = $region12
      $region11: #{tpu_custom_call.1} parent=5 // pred_region
        %s271 = ssub.s32 %s27, 1
        // Predicated region
        $region13: #{tpu_custom_call.1} parent=11 // pred_check
          %p272 = pneg %p126
        $region14: #{tpu_custom_call.1} parent=11 // pred_check_branch
          %274 = sbr.rel (%p272) target = $region16
        $region15: #{tpu_custom_call.1} parent=11 // pred_region
          %s276 = ssub.s32 2048, 2048
          %277 = vsyncadd [#allocation9], %s276
          %s278 = sshll.u32 [#allocation8], 4
          %s279 = int_to_ptr.vmem [resolvable:$true] %s278
          %284 = dma.hbm_to_vmem [thread:$0]  %s3, 2048, %s279, [#allocation9], 128, 128, 8
        $region16: #{tpu_custom_call.1} parent=11 // pred_fallthru
          _
        // Predicated region
        $region17: #{tpu_custom_call.1} parent=11 // pred_check
          %p285 = pneg %p147
        $region18: #{tpu_custom_call.1} parent=11 // pred_check_branch
          %287 = sbr.rel (%p285) target = $region20
        $region19: #{tpu_custom_call.1} parent=11 // pred_region
          %s289 = ssub.s32 16, 16
          %290 = vsyncadd [#allocation9], %s289
          %s292 = sshll.u32 [#allocation10], 4
          %s293 = int_to_ptr.vmem [resolvable:$true] %s292
          %295 = dma.hbm_to_vmem [thread:$0]  %s4, 16, %s293, [#allocation9]
        $region20: #{tpu_custom_call.1} parent=11 // pred_fallthru
          _
        // Predicated region
        $region21: #{tpu_custom_call.1} parent=11 // pred_check
          %p296 = pneg %p168
        $region22: #{tpu_custom_call.1} parent=11 // pred_check_branch
          %298 = sbr.rel (%p296) target = $region24
        $region23: #{tpu_custom_call.1} parent=11 // pred_region
          %s300 = ssub.s32 6144, 6144
          %301 = vsyncadd [#allocation12], %s300
          %s302 = sshll.u32 [#allocation11], 4
          %s303 = int_to_ptr.vmem [resolvable:$true] %s302
          %308 = dma.hbm_to_vmem [thread:$0]  %s5, 6144, %s303, [#allocation12], 384, 384, 24
        $region24: #{tpu_custom_call.1} parent=11 // pred_fallthru
          _
        // Predicated region
        $region25: #{tpu_custom_call.1} parent=11 // pred_check
          %p309 = pneg %p189
        $region26: #{tpu_custom_call.1} parent=11 // pred_check_branch
          %311 = sbr.rel (%p309) target = $region28
        $region27: #{tpu_custom_call.1} parent=11 // pred_region
          %s313 = ssub.s32 4096, 4096
          %314 = vsyncadd [#allocation12], %s313
          %s315 = sshll.u32 [#allocation13], 4
          %s316 = int_to_ptr.vmem [resolvable:$true] %s315
          %321 = dma.hbm_to_vmem [thread:$0]  %s6, 4096, %s316, [#allocation12], 256, 256, 16
        $region28: #{tpu_custom_call.1} parent=11 // pred_fallthru
          _
        // Predicated region
        $region29: #{tpu_custom_call.1} parent=11 // pred_check
          %p322 = pneg %p210
        $region30: #{tpu_custom_call.1} parent=11 // pred_check_branch
          %324 = sbr.rel (%p322) target = $region32
        $region31: #{tpu_custom_call.1} parent=11 // pred_region
          %s326 = ssub.s32 2048, 2048
          %327 = vsyncadd [#allocation15], %s326
          %s328 = sshll.u32 [#allocation14], 4
          %s329 = int_to_ptr.vmem [resolvable:$true] %s328
          %334 = dma.hbm_to_vmem [thread:$0]  %s7, 2048, %s329, [#allocation15], 128, 128, 8
        $region32: #{tpu_custom_call.1} parent=11 // pred_fallthru
          _
        // Predicated region
        $region33: #{tpu_custom_call.1} parent=11 // pred_check
          %p335 = pneg %p231
        $region34: #{tpu_custom_call.1} parent=11 // pred_check_branch
          %337 = sbr.rel (%p335) target = $region36
        $region35: #{tpu_custom_call.1} parent=11 // pred_region
          %s339 = ssub.s32 48, 48
          %340 = vsyncadd [#allocation15], %s339
          %s342 = sshll.u32 [#allocation16], 4
          %s343 = int_to_ptr.vmem [resolvable:$true] %s342
          %345 = dma.hbm_to_vmem [thread:$0]  %s8, 48, %s343, [#allocation15]
        $region36: #{tpu_custom_call.1} parent=11 // pred_fallthru
          _
      $region12: #{tpu_custom_call.1} parent=5 // pred_fallthru
        _
      %p346 = scmp.lt.s32.totalorder %s27, 2
      // Predicated region
      $region37: #{tpu_custom_call.1} parent=5 // pred_check
        %p347 = pneg %p346
      $region38: #{tpu_custom_call.1} parent=5 // pred_check_branch
        %349 = sbr.rel (%p347) target = $region40
      $region39: #{tpu_custom_call.1} parent=5 // pred_region
        // Predicated region
        $region41: #{tpu_custom_call.1} parent=39 // pred_check
          %p350 = pneg %p47
        $region42: #{tpu_custom_call.1} parent=39 // pred_check_branch
          %352 = sbr.rel (%p350) target = $region44
        $region43: #{tpu_custom_call.1} parent=39 // pred_region
          %s353 = sand.u32 %s37, 1
          %s354 = scalar_lea.sflag [#allocation3], %s353
          %s355 = sand.u32 %s37, 1
          %s356 = smul.addr %s355, 32
          %s357 = scalar_lea.vmem [#allocation2], %s356
          %s358 = smul.u32 4, %s27
          %s360 = ssub.s32 512, 512
          %361 = vsyncadd %s354, %s360
          %s362 = smul.addr %s358, 128
          %s363 = scalar_lea.hbm %s0, %s362
          %s364 = sshll.u32 %s357, 4
          %s365 = int_to_ptr.vmem [resolvable:$true] %s364
          %370 = dma.hbm_to_vmem [thread:$0]  %s363, 512, %s365, %s354, 128, 128, 8
        $region44: #{tpu_custom_call.1} parent=39 // pred_fallthru
          _
        // Predicated region
        $region45: #{tpu_custom_call.1} parent=39 // pred_check
          %p371 = pneg %p73
        $region46: #{tpu_custom_call.1} parent=39 // pred_check_branch
          %373 = sbr.rel (%p371) target = $region48
        $region47: #{tpu_custom_call.1} parent=39 // pred_region
          %s374 = sand.u32 %s27, 1
          %s375 = scalar_lea.sflag [#allocation6], %s374
          %s376 = sand.u32 %s63, 1
          %s377 = smul.addr %s376, 32
          %s378 = scalar_lea.vmem [#allocation5], %s377
          %s379 = smul.u32 4, %s27
          %s381 = ssub.s32 512, 512
          %382 = vsyncadd %s375, %s381
          %s383 = smul.addr %s379, 128
          %s384 = scalar_lea.hbm %s1, %s383
          %s385 = sshll.u32 %s378, 4
          %s386 = int_to_ptr.vmem [resolvable:$true] %s385
          %391 = dma.hbm_to_vmem [thread:$0]  %s384, 512, %s386, %s375, 128, 128, 8
        $region48: #{tpu_custom_call.1} parent=39 // pred_fallthru
          _
        // Predicated region
        $region49: #{tpu_custom_call.1} parent=39 // pred_check
          %p392 = pneg %p99
        $region50: #{tpu_custom_call.1} parent=39 // pred_check_branch
          %394 = sbr.rel (%p392) target = $region52
        $region51: #{tpu_custom_call.1} parent=39 // pred_region
          %s395 = sand.u32 %s27, 1
          %s396 = scalar_lea.sflag [#allocation6], %s395
          %s397 = sand.u32 %s89, 1
          %s398 = smul.addr %s397, 32
          %s399 = scalar_lea.vmem [#allocation7], %s398
          %s400 = smul.u32 4, %s27
          %s402 = ssub.s32 512, 512
          %403 = vsyncadd %s396, %s402
          %s404 = smul.addr %s400, 128
          %s405 = scalar_lea.hbm %s2, %s404
          %s406 = sshll.u32 %s399, 4
          %s407 = int_to_ptr.vmem [resolvable:$true] %s406
          %412 = dma.hbm_to_vmem [thread:$0]  %s405, 512, %s407, %s396, 128, 128, 8
        $region52: #{tpu_custom_call.1} parent=39 // pred_fallthru
          _
      $region40: #{tpu_custom_call.1} parent=5 // pred_fallthru
        _
      %p413 = scmp.le.s32.totalorder 1, %s27
      %p414 = scmp.lt.s32.totalorder %s27, 3
      %p415 = pnand %p413, %p414
      %p416 = pneg %p415
      // Predicated region
      $region53: #{tpu_custom_call.1} parent=5 // pred_check
        _
      $region54: #{tpu_custom_call.1} parent=5 // pred_check_branch
        %418 = sbr.rel (%p415) target = $region56
      $region55: #{tpu_custom_call.1} parent=5 // pred_region
        %s419 = ssub.s32 %s27, 1
        %s420 = sand.u32 %s40, 1
        %s421 = scalar_lea.sflag [#allocation3], %s420
        %s422 = sand.u32 %s40, 1
        %s423 = smul.addr %s422, 32
        %s424 = scalar_lea.vmem [#allocation2], %s423
        // Predicated region
        $region57: #{tpu_custom_call.1} parent=55 // pred_check
          %p425 = pneg %p53
        $region58: #{tpu_custom_call.1} parent=55 // pred_check_branch
          %427 = sbr.rel (%p425) target = $region60
        $region59: #{tpu_custom_call.1} parent=55 // pred_region
          %428 = dma.done %s421, 512
        $region60: #{tpu_custom_call.1} parent=55 // pred_fallthru
          _
        %s429 = sand.u32 %s32, 1
        %s430 = scalar_lea.sflag [#allocation6], %s429
        %s431 = sand.u32 %s66, 1
        %s432 = smul.addr %s431, 32
        %s433 = scalar_lea.vmem [#allocation5], %s432
        // Predicated region
        $region61: #{tpu_custom_call.1} parent=55 // pred_check
          %p434 = pneg %p79
        $region62: #{tpu_custom_call.1} parent=55 // pred_check_branch
          %436 = sbr.rel (%p434) target = $region64
        $region63: #{tpu_custom_call.1} parent=55 // pred_region
          %437 = dma.done %s430, 512
        $region64: #{tpu_custom_call.1} parent=55 // pred_fallthru
          _
        %s438 = sand.u32 %s32, 1
        %s439 = scalar_lea.sflag [#allocation6], %s438
        %s440 = sand.u32 %s92, 1
        %s441 = smul.addr %s440, 32
        %s442 = scalar_lea.vmem [#allocation7], %s441
        // Predicated region
        $region65: #{tpu_custom_call.1} parent=55 // pred_check
          %p443 = pneg %p105
        $region66: #{tpu_custom_call.1} parent=55 // pred_check_branch
          %445 = sbr.rel (%p443) target = $region68
        $region67: #{tpu_custom_call.1} parent=55 // pred_region
          %446 = dma.done %s439, 512
        $region68: #{tpu_custom_call.1} parent=55 // pred_fallthru
          _
        // Predicated region
        $region69: #{tpu_custom_call.1} parent=55 // pred_check
          %p447 = pneg %p126
        $region70: #{tpu_custom_call.1} parent=55 // pred_check_branch
          %449 = sbr.rel (%p447) target = $region72
        $region71: #{tpu_custom_call.1} parent=55 // pred_region
          %450 = dma.done [#allocation9], 2048
        $region72: #{tpu_custom_call.1} parent=55 // pred_fallthru
          _
        // Predicated region
        $region73: #{tpu_custom_call.1} parent=55 // pred_check
          %p451 = pneg %p147
        $region74: #{tpu_custom_call.1} parent=55 // pred_check_branch
          %453 = sbr.rel (%p451) target = $region76
        $region75: #{tpu_custom_call.1} parent=55 // pred_region
          %454 = dma.done [#allocation9], 16
        $region76: #{tpu_custom_call.1} parent=55 // pred_fallthru
          _
        // Predicated region
        $region77: #{tpu_custom_call.1} parent=55 // pred_check
          %p455 = pneg %p168
        $region78: #{tpu_custom_call.1} parent=55 // pred_check_branch
          %457 = sbr.rel (%p455) target = $region80
        $region79: #{tpu_custom_call.1} parent=55 // pred_region
          %458 = dma.done [#allocation12], 6144
        $region80: #{tpu_custom_call.1} parent=55 // pred_fallthru
          _
        // Predicated region
        $region81: #{tpu_custom_call.1} parent=55 // pred_check
          %p459 = pneg %p189
        $region82: #{tpu_custom_call.1} parent=55 // pred_check_branch
          %461 = sbr.rel (%p459) target = $region84
        $region83: #{tpu_custom_call.1} parent=55 // pred_region
          %462 = dma.done [#allocation12], 4096
        $region84: #{tpu_custom_call.1} parent=55 // pred_fallthru
          _
        // Predicated region
        $region85: #{tpu_custom_call.1} parent=55 // pred_check
          %p463 = pneg %p210
        $region86: #{tpu_custom_call.1} parent=55 // pred_check_branch
          %465 = sbr.rel (%p463) target = $region88
        $region87: #{tpu_custom_call.1} parent=55 // pred_region
          %466 = dma.done [#allocation15], 2048
        $region88: #{tpu_custom_call.1} parent=55 // pred_fallthru
          _
        // Predicated region
        $region89: #{tpu_custom_call.1} parent=55 // pred_check
          %p467 = pneg %p231
        $region90: #{tpu_custom_call.1} parent=55 // pred_check_branch
          %469 = sbr.rel (%p467) target = $region92
        $region91: #{tpu_custom_call.1} parent=55 // pred_region
          %470 = dma.done [#allocation15], 48
        $region92: #{tpu_custom_call.1} parent=55 // pred_fallthru
          _
        %s471 = sand.u32 %s40, 1
        %s472 = scalar_lea.sflag [#allocation3], %s471
        %s473 = sand.u32 %s40, 1
        %s474 = smul.addr %s473, 32
        %s475 = scalar_lea.vmem [#allocation2], %s474
        %p476 = pneg %p53
        %p477 = pneg %p50
        %s478 = sand.u32 %s32, 1
        %s479 = scalar_lea.sflag [#allocation6], %s478
        %s480 = sand.u32 %s66, 1
        %s481 = smul.addr %s480, 32
        %s482 = scalar_lea.vmem [#allocation5], %s481
        %p483 = pneg %p79
        %p484 = pneg %p76
        %s485 = sand.u32 %s32, 1
        %s486 = scalar_lea.sflag [#allocation6], %s485
        %s487 = sand.u32 %s92, 1
        %s488 = smul.addr %s487, 32
        %s489 = scalar_lea.vmem [#allocation7], %s488
        %p490 = pneg %p105
        %p491 = pneg %p102
        %p492 = pneg %p126
        %p493 = pneg %p123
        %p494 = pneg %p147
        %p495 = pneg %p144
        %p496 = pneg %p168
        %p497 = pneg %p165
        %p498 = pneg %p189
        %p499 = pneg %p186
        %p500 = pneg %p210
        %p501 = pneg %p207
        %p502 = pneg %p231
        %p503 = pneg %p228
        %p504 = pneg %p257
        %p505 = pneg %p254
        %s506 = sand.u32 %s244, 1
        %s507 = scalar_lea.sflag [#allocation4], %s506
        %s508 = sand.u32 %s244, 1
        %s509 = smul.addr %s508, 32
        %s510 = scalar_lea.vmem [#allocation17], %s509
        %s511 = smul.u32 4, %s32
        %s512 = smul.u32 4, %s32
        %s513 = smul.u32 4, %s32
        %s514 = smul.u32 4, %s32
        %v515 = vld [vmem:[%s424] sm:$0xff]
        %v516 = vld [vmem:[%s424 + $0x8] sm:$0xff]
        %v517 = vld [vmem:[%s424 + $0x10] sm:$0xff]
        %v518 = vld [vmem:[%s424 + $0x18] sm:$0xff]
        %v519 = vld [vmem:[%s433] sm:$0xff]
        %v520 = vld [vmem:[%s433 + $0x8] sm:$0xff]
        %v521 = vld [vmem:[%s433 + $0x10] sm:$0xff]
        %v522 = vld [vmem:[%s433 + $0x18] sm:$0xff]
        %v523 = vld [vmem:[%s442] sm:$0xff]
        %v524 = vld [vmem:[%s442 + $0x8] sm:$0xff]
        %v525 = vld [vmem:[%s442 + $0x10] sm:$0xff]
        %v526 = vld [vmem:[%s442 + $0x18] sm:$0xff]
        %v527 = vld [vmem:[#allocation8] sm:$0xff]
        %v528 = vld [vmem:[#allocation8 + $0x8] sm:$0xff]
        %v529 = vld [vmem:[#allocation8 + $0x10] sm:$0xff]
        %v530 = vld [vmem:[#allocation8 + $0x18] sm:$0xff]
        %v531 = vld [vmem:[#allocation8 + $0x20] sm:$0xff]
        %v532 = vld [vmem:[#allocation8 + $0x28] sm:$0xff]
        %v533 = vld [vmem:[#allocation8 + $0x30] sm:$0xff]
        %v534 = vld [vmem:[#allocation8 + $0x38] sm:$0xff]
        %v535 = vld [vmem:[#allocation8 + $0x40] sm:$0xff]
        %v536 = vld [vmem:[#allocation8 + $0x48] sm:$0xff]
        %v537 = vld [vmem:[#allocation8 + $0x50] sm:$0xff]
        %v538 = vld [vmem:[#allocation8 + $0x58] sm:$0xff]
        %v539 = vld [vmem:[#allocation8 + $0x60] sm:$0xff]
        %v540 = vld [vmem:[#allocation8 + $0x68] sm:$0xff]
        %v541 = vld [vmem:[#allocation8 + $0x70] sm:$0xff]
        %v542 = vld [vmem:[#allocation8 + $0x78] sm:$0xff]
        %v543 = vld [vmem:[#allocation10] sm:$0x1]
        %v545 = vlaneseq
        %v546 = vshrl.u32 %v545, 7
        %v547 = vsub.s32 0, %v546
        %v548 = vrot.slane %v543, %v547
        %550 = vmatprep.subr.mxu0 0.0
        %551 = vmatpush1.msra.mxu0 %v527
        %552 = vmatprep.subr.mxu0 0.0
        %553 = vmatpush1.msra.mxu0 %v528
        %554 = vmatprep.subr.mxu0 0.0
        %555 = vmatpush1.msra.mxu0 %v529
        %556 = vmatprep.subr.mxu0 0.0
        %557 = vmatpush1.msra.mxu0 %v530
        %558 = vmatprep.subr.mxu0 0.0
        %559 = vmatpush1.msra.mxu0 %v531
        %560 = vmatprep.subr.mxu0 0.0
        %561 = vmatpush1.msra.mxu0 %v532
        %562 = vmatprep.subr.mxu0 0.0
        %563 = vmatpush1.msra.mxu0 %v533
        %564 = vmatprep.subr.mxu0 0.0
        %565 = vmatpush1.msra.mxu0 %v534
        %566 = vmatprep.subr.mxu0 0.0
        %567 = vmatpush1.msra.mxu0 %v535
        %568 = vmatprep.subr.mxu0 0.0
        %569 = vmatpush1.msra.mxu0 %v536
        %570 = vmatprep.subr.mxu0 0.0
        %571 = vmatpush1.msra.mxu0 %v537
        %572 = vmatprep.subr.mxu0 0.0
        %573 = vmatpush1.msra.mxu0 %v538
        %574 = vmatprep.subr.mxu0 0.0
        %575 = vmatpush1.msra.mxu0 %v539
        %576 = vmatprep.subr.mxu0 0.0
        %577 = vmatpush1.msra.mxu0 %v540
        %578 = vmatprep.subr.mxu0 0.0
        %579 = vmatpush1.msra.mxu0 %v541
        %580 = vmatprep.subr.mxu0 0.0
        %581 = vmatpush1.msra.mxu0 %v542
        %582 = vmatprep.subr.mxu0 0.0
        %583 = vmatpush1.msra.mxu0 0.0
        %584 = vmatprep.subr.mxu0 0.0
        %585 = vmatpush1.msra.mxu0 0.0
        %586 = vmatprep.subr.mxu0 0.0
        %587 = vmatpush1.msra.mxu0 0.0
        %588 = vmatprep.subr.mxu0 0.0
        %589 = vmatpush1.msra.mxu0 0.0
        %590 = vmatprep.subr.mxu0 0.0
        %591 = vmatpush1.msra.mxu0 0.0
        %592 = vmatprep.subr.mxu0 0.0
        %593 = vmatpush1.msra.mxu0 0.0
        %594 = vmatprep.subr.mxu0 0.0
        %595 = vmatpush1.msra.mxu0 0.0
        %596 = vmatprep.subr.mxu0 0.0
        %597 = vmatpush1.msra.mxu0 0.0
        %598 = vmatprep.subr.mxu0 0.0
        %599 = vmatpush1.msra.mxu0 0.0
        %600 = vmatprep.subr.mxu0 0.0
        %601 = vmatpush1.msra.mxu0 0.0
        %602 = vmatprep.subr.mxu0 0.0
        %603 = vmatpush1.msra.mxu0 0.0
        %604 = vmatprep.subr.mxu0 0.0
        %605 = vmatpush1.msra.mxu0 0.0
        %606 = vmatprep.subr.mxu0 0.0
        %607 = vmatpush1.msra.mxu0 0.0
        %608 = vmatprep.subr.mxu0 0.0
        %609 = vmatpush1.msra.mxu0 0.0
        %610 = vmatprep.subr.mxu0 0.0
        %611 = vmatpush1.msra.mxu0 0.0
        %612 = vmatprep.subr.mxu0 0.0
        %613 = vmatpush1.msra.mxu0 0.0
        %614 = vmatprep.mubr.f32.mxu0 0.0
        %615 = vmatmul.mubr.f32.gmra.mrb[0].mxu0 %v515
        %v616 = vpop.f32.mrb[0].mxu0
        %v617 = vadd.f32 %v548, %v616
        %v618 = vpop.f32.mrb[0].mxu0
        %619 = vmatprep.mubr.f32.mxu0 0.0
        %620 = vmatmul.mubr.f32.gmra.mrb[0].mxu0 %v516
        %v621 = vpop.f32.mrb[0].mxu0
        %v622 = vadd.f32 %v548, %v621
        %v623 = vpop.f32.mrb[0].mxu0
        %624 = vmatprep.mubr.f32.mxu0 0.0
        %625 = vmatmul.mubr.f32.gmra.mrb[0].mxu0 %v517
        %v626 = vpop.f32.mrb[0].mxu0
        %v627 = vadd.f32 %v548, %v626
        %v628 = vpop.f32.mrb[0].mxu0
        %629 = vmatprep.mubr.f32.mxu0 0.0
        %630 = vmatmul.mubr.f32.gmra.mrb[0].mxu0 %v518
        %v631 = vpop.f32.mrb[0].mxu0
        %v632 = vadd.f32 %v548, %v631
        %v633 = vpop.f32.mrb[0].mxu0
        %634 = vdwg.mxu0
        %vm635 = vcmp.gt.f32.partialorder %v617, 0.0
        %vm636 = vcmp.gt.f32.partialorder %v622, 0.0
        %vm637 = vcmp.gt.f32.partialorder %v627, 0.0
        %vm638 = vcmp.gt.f32.partialorder %v632, 0.0
        %v639 = vmin.f32 %v617, 0.0
        %v640 = vmin.f32 %v622, 0.0
        %v641 = vmin.f32 %v627, 0.0
        %v642 = vmin.f32 %v632, 0.0
        %v643 = vmul.f32 %v639, 1.442695
        %v644 = vpow.pop %v643
        %v645 = vmul.f32 %v640, 1.442695
        %v646 = vpow.pop %v645
        %v647 = vmul.f32 %v641, 1.442695
        %v648 = vpow.pop %v647
        %v649 = vmul.f32 %v642, 1.442695
        %v650 = vpow.pop %v649
        %v651 = vsub.f32 %v644, 1.0
        %v652 = vsub.f32 %v646, 1.0
        %v653 = vsub.f32 %v648, 1.0
        %v654 = vsub.f32 %v650, 1.0
        %v655 = vsel %vm635, %v617, %v651
        %v656 = vsel %vm636, %v622, %v652
        %v657 = vsel %vm637, %v627, %v653
        %v658 = vsel %vm638, %v632, %v654
        %660 = vset.pattern.permute.xlu0 0
        %661 = vperm.xlu0 %660, %v523
        %v662 = vpop.permute.xlu0 %661
        %665 = vset.pattern.permute.xlu0 0
        %666 = vperm.xlu0 %665, %v524
        %v667 = vpop.permute.xlu0 %666
        %670 = vset.pattern.permute.xlu0 0
        %671 = vperm.xlu0 %670, %v525
        %v672 = vpop.permute.xlu0 %671
        %675 = vset.pattern.permute.xlu0 0
        %676 = vperm.xlu0 %675, %v526
        %v677 = vpop.permute.xlu0 %676
        %v679 = vmul.f32 %v662, %v655
        %v680 = vmul.f32 %v667, %v656
        %v681 = vmul.f32 %v672, %v657
        %v682 = vmul.f32 %v677, %v658
        %v683 = vld [vmem:[#allocation11] sm:$0xff]
        %v684 = vld [vmem:[#allocation11 + $0x8] sm:$0xff]
        %v685 = vld [vmem:[#allocation11 + $0x10] sm:$0xff]
        %v686 = vld [vmem:[#allocation11 + $0x18] sm:$0xff]
        %v687 = vld [vmem:[#allocation11 + $0x20] sm:$0xff]
        %v688 = vld [vmem:[#allocation11 + $0x28] sm:$0xff]
        %v689 = vld [vmem:[#allocation11 + $0x30] sm:$0xff]
        %v690 = vld [vmem:[#allocation11 + $0x38] sm:$0xff]
        %v691 = vld [vmem:[#allocation11 + $0x40] sm:$0xff]
        %v692 = vld [vmem:[#allocation11 + $0x48] sm:$0xff]
        %v693 = vld [vmem:[#allocation11 + $0x50] sm:$0xff]
        %v694 = vld [vmem:[#allocation11 + $0x58] sm:$0xff]
        %v695 = vld [vmem:[#allocation11 + $0x60] sm:$0xff]
        %v696 = vld [vmem:[#allocation11 + $0x68] sm:$0xff]
        %v697 = vld [vmem:[#allocation11 + $0x70] sm:$0xff]
        %v698 = vld [vmem:[#allocation11 + $0x78] sm:$0xff]
        %v699 = vld [vmem:[#allocation11 + $0x80] sm:$0xff]
        %v700 = vld [vmem:[#allocation11 + $0x88] sm:$0xff]
        %v701 = vld [vmem:[#allocation11 + $0x90] sm:$0xff]
        %v702 = vld [vmem:[#allocation11 + $0x98] sm:$0xff]
        %v703 = vld [vmem:[#allocation11 + $0xa0] sm:$0xff]
        %v704 = vld [vmem:[#allocation11 + $0xa8] sm:$0xff]
        %v705 = vld [vmem:[#allocation11 + $0xb0] sm:$0xff]
        %v706 = vld [vmem:[#allocation11 + $0xb8] sm:$0xff]
        %v707 = vld [vmem:[#allocation11 + $0xc0] sm:$0xff]
        %v708 = vld [vmem:[#allocation11 + $0xc8] sm:$0xff]
        %v709 = vld [vmem:[#allocation11 + $0xd0] sm:$0xff]
        %v710 = vld [vmem:[#allocation11 + $0xd8] sm:$0xff]
        %v711 = vld [vmem:[#allocation11 + $0xe0] sm:$0xff]
        %v712 = vld [vmem:[#allocation11 + $0xe8] sm:$0xff]
        %v713 = vld [vmem:[#allocation11 + $0xf0] sm:$0xff]
        %v714 = vld [vmem:[#allocation11 + $0xf8] sm:$0xff]
        %v715 = vld [vmem:[#allocation11 + $0x100] sm:$0xff]
        %v716 = vld [vmem:[#allocation11 + $0x108] sm:$0xff]
        %v717 = vld [vmem:[#allocation11 + $0x110] sm:$0xff]
        %v718 = vld [vmem:[#allocation11 + $0x118] sm:$0xff]
        %v719 = vld [vmem:[#allocation11 + $0x120] sm:$0xff]
        %v720 = vld [vmem:[#allocation11 + $0x128] sm:$0xff]
        %v721 = vld [vmem:[#allocation11 + $0x130] sm:$0xff]
        %v722 = vld [vmem:[#allocation11 + $0x138] sm:$0xff]
        %v723 = vld [vmem:[#allocation11 + $0x140] sm:$0xff]
        %v724 = vld [vmem:[#allocation11 + $0x148] sm:$0xff]
        %v725 = vld [vmem:[#allocation11 + $0x150] sm:$0xff]
        %v726 = vld [vmem:[#allocation11 + $0x158] sm:$0xff]
        %v727 = vld [vmem:[#allocation11 + $0x160] sm:$0xff]
        %v728 = vld [vmem:[#allocation11 + $0x168] sm:$0xff]
        %v729 = vld [vmem:[#allocation11 + $0x170] sm:$0xff]
        %v730 = vld [vmem:[#allocation11 + $0x178] sm:$0xff]
        %v731 = vld [vmem:[#allocation13] sm:$0xff]
        %v732 = vld [vmem:[#allocation13 + $0x8] sm:$0xff]
        %v733 = vld [vmem:[#allocation13 + $0x10] sm:$0xff]
        %v734 = vld [vmem:[#allocation13 + $0x18] sm:$0xff]
        %v735 = vld [vmem:[#allocation13 + $0x20] sm:$0xff]
        %v736 = vld [vmem:[#allocation13 + $0x28] sm:$0xff]
        %v737 = vld [vmem:[#allocation13 + $0x30] sm:$0xff]
        %v738 = vld [vmem:[#allocation13 + $0x38] sm:$0xff]
        %v739 = vld [vmem:[#allocation13 + $0x40] sm:$0xff]
        %v740 = vld [vmem:[#allocation13 + $0x48] sm:$0xff]
        %v741 = vld [vmem:[#allocation13 + $0x50] sm:$0xff]
        %v742 = vld [vmem:[#allocation13 + $0x58] sm:$0xff]
        %v743 = vld [vmem:[#allocation13 + $0x60] sm:$0xff]
        %v744 = vld [vmem:[#allocation13 + $0x68] sm:$0xff]
        %v745 = vld [vmem:[#allocation13 + $0x70] sm:$0xff]
        %v746 = vld [vmem:[#allocation13 + $0x78] sm:$0xff]
        %v747 = vld [vmem:[#allocation13 + $0x80] sm:$0xff]
        %v748 = vld [vmem:[#allocation13 + $0x88] sm:$0xff]
        %v749 = vld [vmem:[#allocation13 + $0x90] sm:$0xff]
        %v750 = vld [vmem:[#allocation13 + $0x98] sm:$0xff]
        %v751 = vld [vmem:[#allocation13 + $0xa0] sm:$0xff]
        %v752 = vld [vmem:[#allocation13 + $0xa8] sm:$0xff]
        %v753 = vld [vmem:[#allocation13 + $0xb0] sm:$0xff]
        %v754 = vld [vmem:[#allocation13 + $0xb8] sm:$0xff]
        %v755 = vld [vmem:[#allocation13 + $0xc0] sm:$0xff]
        %v756 = vld [vmem:[#allocation13 + $0xc8] sm:$0xff]
        %v757 = vld [vmem:[#allocation13 + $0xd0] sm:$0xff]
        %v758 = vld [vmem:[#allocation13 + $0xd8] sm:$0xff]
        %v759 = vld [vmem:[#allocation13 + $0xe0] sm:$0xff]
        %v760 = vld [vmem:[#allocation13 + $0xe8] sm:$0xff]
        %v761 = vld [vmem:[#allocation13 + $0xf0] sm:$0xff]
        %v762 = vld [vmem:[#allocation13 + $0xf8] sm:$0xff]
        %v763 = vld [vmem:[#allocation14] sm:$0xff]
        %v764 = vld [vmem:[#allocation14 + $0x8] sm:$0xff]
        %v765 = vld [vmem:[#allocation14 + $0x10] sm:$0xff]
        %v766 = vld [vmem:[#allocation14 + $0x18] sm:$0xff]
        %v767 = vld [vmem:[#allocation14 + $0x20] sm:$0xff]
        %v768 = vld [vmem:[#allocation14 + $0x28] sm:$0xff]
        %v769 = vld [vmem:[#allocation14 + $0x30] sm:$0xff]
        %v770 = vld [vmem:[#allocation14 + $0x38] sm:$0xff]
        %v771 = vld [vmem:[#allocation14 + $0x40] sm:$0xff]
        %v772 = vld [vmem:[#allocation14 + $0x48] sm:$0xff]
        %v773 = vld [vmem:[#allocation14 + $0x50] sm:$0xff]
        %v774 = vld [vmem:[#allocation14 + $0x58] sm:$0xff]
        %v775 = vld [vmem:[#allocation14 + $0x60] sm:$0xff]
        %v776 = vld [vmem:[#allocation14 + $0x68] sm:$0xff]
        %v777 = vld [vmem:[#allocation14 + $0x70] sm:$0xff]
        %v778 = vld [vmem:[#allocation14 + $0x78] sm:$0xff]
        %v779 = vld [vmem:[#allocation16] sm:$0x1]
        %v780 = vld [vmem:[#allocation16 + $0x1] sm:$0x1]
        %v781 = vld [vmem:[#allocation16 + $0x2] sm:$0x1]
        %vm782 = vcmask 64512
        %v784 = vsel %vm782, %v519, 0
        %786 = vmatprep.subr.mxu0 0.0
        %787 = vmatpush1.msra.mxu0 %v679
        %788 = vmatprep.subr.mxu0 0.0
        %789 = vmatpush1.msra.mxu0 0.0
        %790 = vmatprep.subr.mxu0 0.0
        %791 = vmatpush1.msra.mxu0 0.0
        %792 = vmatprep.subr.mxu0 0.0
        %793 = vmatpush1.msra.mxu0 0.0
        %794 = vmatprep.subr.mxu0 0.0
        %795 = vmatpush1.msra.mxu0 0.0
        %796 = vmatprep.subr.mxu0 0.0
        %797 = vmatpush1.msra.mxu0 0.0
        %798 = vmatprep.subr.mxu0 0.0
        %799 = vmatpush1.msra.mxu0 0.0
        %800 = vmatprep.subr.mxu0 0.0
        %801 = vmatpush1.msra.mxu0 0.0
        %802 = vmatprep.subr.mxu0 0.0
        %803 = vmatpush1.msra.mxu0 0.0
        %804 = vmatprep.subr.mxu0 0.0
        %805 = vmatpush1.msra.mxu0 0.0
        %806 = vmatprep.subr.mxu0 0.0
        %807 = vmatpush1.msra.mxu0 0.0
        %808 = vmatprep.subr.mxu0 0.0
        %809 = vmatpush1.msra.mxu0 0.0
        %810 = vmatprep.subr.mxu0 0.0
        %811 = vmatpush1.msra.mxu0 0.0
        %812 = vmatprep.subr.mxu0 0.0
        %813 = vmatpush1.msra.mxu0 0.0
        %814 = vmatprep.subr.mxu0 0.0
        %815 = vmatpush1.msra.mxu0 0.0
        %816 = vmatprep.subr.mxu0 0.0
        %817 = vmatpush1.msra.mxu0 0.0
        %818 = vmatprep.subr.mxu0 0.0
        %819 = vmatpush1.msra.mxu0 0.0
        %820 = vmatprep.subr.mxu0 0.0
        %821 = vmatpush1.msra.mxu0 0.0
        %822 = vmatprep.subr.mxu0 0.0
        %823 = vmatpush1.msra.mxu0 0.0
        %824 = vmatprep.subr.mxu0 0.0
        %825 = vmatpush1.msra.mxu0 0.0
        %826 = vmatprep.subr.mxu0 0.0
        %827 = vmatpush1.msra.mxu0 0.0
        %828 = vmatprep.subr.mxu0 0.0
        %829 = vmatpush1.msra.mxu0 0.0
        %830 = vmatprep.subr.mxu0 0.0
        %831 = vmatpush1.msra.mxu0 0.0
        %832 = vmatprep.subr.mxu0 0.0
        %833 = vmatpush1.msra.mxu0 0.0
        %834 = vmatprep.subr.mxu0 0.0
        %835 = vmatpush1.msra.mxu0 0.0
        %836 = vmatprep.subr.mxu0 0.0
        %837 = vmatpush1.msra.mxu0 0.0
        %838 = vmatprep.subr.mxu0 0.0
        %839 = vmatpush1.msra.mxu0 0.0
        %840 = vmatprep.subr.mxu0 0.0
        %841 = vmatpush1.msra.mxu0 0.0
        %842 = vmatprep.subr.mxu0 0.0
        %843 = vmatpush1.msra.mxu0 0.0
        %844 = vmatprep.subr.mxu0 0.0
        %845 = vmatpush1.msra.mxu0 0.0
        %846 = vmatprep.subr.mxu0 0.0
        %847 = vmatpush1.msra.mxu0 0.0
        %848 = vmatprep.subr.mxu0 0.0
        %849 = vmatpush1.msra.mxu0 0.0
        %850 = vmatprep.mubr.f32.mxu0 0.0
        %851 = vmatmul.mubr.f32.gmra.mrb[0].mxu0 %v784
        %v852 = vpop.f32.mrb[0].mxu0
        %v853 = vadd.f32 0.0, %v852
        %v854 = vpop.f32.mrb[0].mxu0
        %855 = vdwg.mxu0
        %v857 = vsel %vm782, %v520, 0
        %859 = vmatprep.subr.mxu0 0.0
        %860 = vmatpush1.msra.mxu0 %v680
        %861 = vmatprep.subr.mxu0 0.0
        %862 = vmatpush1.msra.mxu0 0.0
        %863 = vmatprep.subr.mxu0 0.0
        %864 = vmatpush1.msra.mxu0 0.0
        %865 = vmatprep.subr.mxu0 0.0
        %866 = vmatpush1.msra.mxu0 0.0
        %867 = vmatprep.subr.mxu0 0.0
        %868 = vmatpush1.msra.mxu0 0.0
        %869 = vmatprep.subr.mxu0 0.0
        %870 = vmatpush1.msra.mxu0 0.0
        %871 = vmatprep.subr.mxu0 0.0
        %872 = vmatpush1.msra.mxu0 0.0
        %873 = vmatprep.subr.mxu0 0.0
        %874 = vmatpush1.msra.mxu0 0.0
        %875 = vmatprep.subr.mxu0 0.0
        %876 = vmatpush1.msra.mxu0 0.0
        %877 = vmatprep.subr.mxu0 0.0
        %878 = vmatpush1.msra.mxu0 0.0
        %879 = vmatprep.subr.mxu0 0.0
        %880 = vmatpush1.msra.mxu0 0.0
        %881 = vmatprep.subr.mxu0 0.0
        %882 = vmatpush1.msra.mxu0 0.0
        %883 = vmatprep.subr.mxu0 0.0
        %884 = vmatpush1.msra.mxu0 0.0
        %885 = vmatprep.subr.mxu0 0.0
        %886 = vmatpush1.msra.mxu0 0.0
        %887 = vmatprep.subr.mxu0 0.0
        %888 = vmatpush1.msra.mxu0 0.0
        %889 = vmatprep.subr.mxu0 0.0
        %890 = vmatpush1.msra.mxu0 0.0
        %891 = vmatprep.subr.mxu0 0.0
        %892 = vmatpush1.msra.mxu0 0.0
        %893 = vmatprep.subr.mxu0 0.0
        %894 = vmatpush1.msra.mxu0 0.0
        %895 = vmatprep.subr.mxu0 0.0
        %896 = vmatpush1.msra.mxu0 0.0
        %897 = vmatprep.subr.mxu0 0.0
        %898 = vmatpush1.msra.mxu0 0.0
        %899 = vmatprep.subr.mxu0 0.0
        %900 = vmatpush1.msra.mxu0 0.0
        %901 = vmatprep.subr.mxu0 0.0
        %902 = vmatpush1.msra.mxu0 0.0
        %903 = vmatprep.subr.mxu0 0.0
        %904 = vmatpush1.msra.mxu0 0.0
        %905 = vmatprep.subr.mxu0 0.0
        %906 = vmatpush1.msra.mxu0 0.0
        %907 = vmatprep.subr.mxu0 0.0
        %908 = vmatpush1.msra.mxu0 0.0
        %909 = vmatprep.subr.mxu0 0.0
        %910 = vmatpush1.msra.mxu0 0.0
        %911 = vmatprep.subr.mxu0 0.0
        %912 = vmatpush1.msra.mxu0 0.0
        %913 = vmatprep.subr.mxu0 0.0
        %914 = vmatpush1.msra.mxu0 0.0
        %915 = vmatprep.subr.mxu0 0.0
        %916 = vmatpush1.msra.mxu0 0.0
        %917 = vmatprep.subr.mxu0 0.0
        %918 = vmatpush1.msra.mxu0 0.0
        %919 = vmatprep.subr.mxu0 0.0
        %920 = vmatpush1.msra.mxu0 0.0
        %921 = vmatprep.subr.mxu0 0.0
        %922 = vmatpush1.msra.mxu0 0.0
        %923 = vmatprep.mubr.f32.mxu0 0.0
        %924 = vmatmul.mubr.f32.gmra.mrb[0].mxu0 %v857
        %v925 = vpop.f32.mrb[0].mxu0
        %v926 = vadd.f32 0.0, %v925
        %v927 = vpop.f32.mrb[0].mxu0
        %928 = vdwg.mxu0
        %v930 = vsel %vm782, %v521, 0
        %932 = vmatprep.subr.mxu0 0.0
        %933 = vmatpush1.msra.mxu0 %v681
        %934 = vmatprep.subr.mxu0 0.0
        %935 = vmatpush1.msra.mxu0 0.0
        %936 = vmatprep.subr.mxu0 0.0
        %937 = vmatpush1.msra.mxu0 0.0
        %938 = vmatprep.subr.mxu0 0.0
        %939 = vmatpush1.msra.mxu0 0.0
        %940 = vmatprep.subr.mxu0 0.0
        %941 = vmatpush1.msra.mxu0 0.0
        %942 = vmatprep.subr.mxu0 0.0
        %943 = vmatpush1.msra.mxu0 0.0
        %944 = vmatprep.subr.mxu0 0.0
        %945 = vmatpush1.msra.mxu0 0.0
        %946 = vmatprep.subr.mxu0 0.0
        %947 = vmatpush1.msra.mxu0 0.0
        %948 = vmatprep.subr.mxu0 0.0
        %949 = vmatpush1.msra.mxu0 0.0
        %950 = vmatprep.subr.mxu0 0.0
        %951 = vmatpush1.msra.mxu0 0.0
        %952 = vmatprep.subr.mxu0 0.0
        %953 = vmatpush1.msra.mxu0 0.0
        %954 = vmatprep.subr.mxu0 0.0
        %955 = vmatpush1.msra.mxu0 0.0
        %956 = vmatprep.subr.mxu0 0.0
        %957 = vmatpush1.msra.mxu0 0.0
        %958 = vmatprep.subr.mxu0 0.0
        %959 = vmatpush1.msra.mxu0 0.0
        %960 = vmatprep.subr.mxu0 0.0
        %961 = vmatpush1.msra.mxu0 0.0
        %962 = vmatprep.subr.mxu0 0.0
        %963 = vmatpush1.msra.mxu0 0.0
        %964 = vmatprep.subr.mxu0 0.0
        %965 = vmatpush1.msra.mxu0 0.0
        %966 = vmatprep.subr.mxu0 0.0
        %967 = vmatpush1.msra.mxu0 0.0
        %968 = vmatprep.subr.mxu0 0.0
        %969 = vmatpush1.msra.mxu0 0.0
        %970 = vmatprep.subr.mxu0 0.0
        %971 = vmatpush1.msra.mxu0 0.0
        %972 = vmatprep.subr.mxu0 0.0
        %973 = vmatpush1.msra.mxu0 0.0
        %974 = vmatprep.subr.mxu0 0.0
        %975 = vmatpush1.msra.mxu0 0.0
        %976 = vmatprep.subr.mxu0 0.0
        %977 = vmatpush1.msra.mxu0 0.0
        %978 = vmatprep.subr.mxu0 0.0
        %979 = vmatpush1.msra.mxu0 0.0
        %980 = vmatprep.subr.mxu0 0.0
        %981 = vmatpush1.msra.mxu0 0.0
        %982 = vmatprep.subr.mxu0 0.0
        %983 = vmatpush1.msra.mxu0 0.0
        %984 = vmatprep.subr.mxu0 0.0
        %985 = vmatpush1.msra.mxu0 0.0
        %986 = vmatprep.subr.mxu0 0.0
        %987 = vmatpush1.msra.mxu0 0.0
        %988 = vmatprep.subr.mxu0 0.0
        %989 = vmatpush1.msra.mxu0 0.0
        %990 = vmatprep.subr.mxu0 0.0
        %991 = vmatpush1.msra.mxu0 0.0
        %992 = vmatprep.subr.mxu0 0.0
        %993 = vmatpush1.msra.mxu0 0.0
        %994 = vmatprep.subr.mxu0 0.0
        %995 = vmatpush1.msra.mxu0 0.0
        %996 = vmatprep.mubr.f32.mxu0 0.0
        %997 = vmatmul.mubr.f32.gmra.mrb[0].mxu0 %v930
        %v998 = vpop.f32.mrb[0].mxu0
        %v999 = vadd.f32 0.0, %v998
        %v1000 = vpop.f32.mrb[0].mxu0
        %1001 = vdwg.mxu0
        %v1003 = vsel %vm782, %v522, 0
        %1005 = vmatprep.subr.mxu0 0.0
        %1006 = vmatpush1.msra.mxu0 %v682
        %1007 = vmatprep.subr.mxu0 0.0
        %1008 = vmatpush1.msra.mxu0 0.0
        %1009 = vmatprep.subr.mxu0 0.0
        %1010 = vmatpush1.msra.mxu0 0.0
        %1011 = vmatprep.subr.mxu0 0.0
        %1012 = vmatpush1.msra.mxu0 0.0
        %1013 = vmatprep.subr.mxu0 0.0
        %1014 = vmatpush1.msra.mxu0 0.0
        %1015 = vmatprep.subr.mxu0 0.0
        %1016 = vmatpush1.msra.mxu0 0.0
        %1017 = vmatprep.subr.mxu0 0.0
        %1018 = vmatpush1.msra.mxu0 0.0
        %1019 = vmatprep.subr.mxu0 0.0
        %1020 = vmatpush1.msra.mxu0 0.0
        %1021 = vmatprep.subr.mxu0 0.0
        %1022 = vmatpush1.msra.mxu0 0.0
        %1023 = vmatprep.subr.mxu0 0.0
        %1024 = vmatpush1.msra.mxu0 0.0
        %1025 = vmatprep.subr.mxu0 0.0
        %1026 = vmatpush1.msra.mxu0 0.0
        %1027 = vmatprep.subr.mxu0 0.0
        %1028 = vmatpush1.msra.mxu0 0.0
        %1029 = vmatprep.subr.mxu0 0.0
        %1030 = vmatpush1.msra.mxu0 0.0
        %1031 = vmatprep.subr.mxu0 0.0
        %1032 = vmatpush1.msra.mxu0 0.0
        %1033 = vmatprep.subr.mxu0 0.0
        %1034 = vmatpush1.msra.mxu0 0.0
        %1035 = vmatprep.subr.mxu0 0.0
        %1036 = vmatpush1.msra.mxu0 0.0
        %1037 = vmatprep.subr.mxu0 0.0
        %1038 = vmatpush1.msra.mxu0 0.0
        %1039 = vmatprep.subr.mxu0 0.0
        %1040 = vmatpush1.msra.mxu0 0.0
        %1041 = vmatprep.subr.mxu0 0.0
        %1042 = vmatpush1.msra.mxu0 0.0
        %1043 = vmatprep.subr.mxu0 0.0
        %1044 = vmatpush1.msra.mxu0 0.0
        %1045 = vmatprep.subr.mxu0 0.0
        %1046 = vmatpush1.msra.mxu0 0.0
        %1047 = vmatprep.subr.mxu0 0.0
        %1048 = vmatpush1.msra.mxu0 0.0
        %1049 = vmatprep.subr.mxu0 0.0
        %1050 = vmatpush1.msra.mxu0 0.0
        %1051 = vmatprep.subr.mxu0 0.0
        %1052 = vmatpush1.msra.mxu0 0.0
        %1053 = vmatprep.subr.mxu0 0.0
        %1054 = vmatpush1.msra.mxu0 0.0
        %1055 = vmatprep.subr.mxu0 0.0
        %1056 = vmatpush1.msra.mxu0 0.0
        %1057 = vmatprep.subr.mxu0 0.0
        %1058 = vmatpush1.msra.mxu0 0.0
        %1059 = vmatprep.subr.mxu0 0.0
        %1060 = vmatpush1.msra.mxu0 0.0
        %1061 = vmatprep.subr.mxu0 0.0
        %1062 = vmatpush1.msra.mxu0 0.0
        %1063 = vmatprep.subr.mxu0 0.0
        %1064 = vmatpush1.msra.mxu0 0.0
        %1065 = vmatprep.subr.mxu0 0.0
        %1066 = vmatpush1.msra.mxu0 0.0
        %1067 = vmatprep.subr.mxu0 0.0
        %1068 = vmatpush1.msra.mxu0 0.0
        %1069 = vmatprep.mubr.f32.mxu0 0.0
        %1070 = vmatmul.mubr.f32.gmra.mrb[0].mxu0 %v1003
        %v1071 = vpop.f32.mrb[0].mxu0
        %v1072 = vadd.f32 0.0, %v1071
        %v1073 = vpop.f32.mrb[0].mxu0
        %1074 = vdwg.mxu0
        %1075 = vmatprep.subr.mxu0 %v684
        %1076 = vmatpush1.msra.mxu0 %v683
        %1077 = vmatprep.subr.mxu0 %v687
        %1078 = vmatpush1.msra.mxu0 %v686
        %1079 = vmatprep.subr.mxu0 %v690
        %1080 = vmatpush1.msra.mxu0 %v689
        %1081 = vmatprep.subr.mxu0 %v693
        %1082 = vmatpush1.msra.mxu0 %v692
        %1083 = vmatprep.subr.mxu0 %v696
        %1084 = vmatpush1.msra.mxu0 %v695
        %1085 = vmatprep.subr.mxu0 %v699
        %1086 = vmatpush1.msra.mxu0 %v698
        %1087 = vmatprep.subr.mxu0 %v702
        %1088 = vmatpush1.msra.mxu0 %v701
        %1089 = vmatprep.subr.mxu0 %v705
        %1090 = vmatpush1.msra.mxu0 %v704
        %1091 = vmatprep.subr.mxu0 %v708
        %1092 = vmatpush1.msra.mxu0 %v707
        %1093 = vmatprep.subr.mxu0 %v711
        %1094 = vmatpush1.msra.mxu0 %v710
        %1095 = vmatprep.subr.mxu0 %v714
        %1096 = vmatpush1.msra.mxu0 %v713
        %1097 = vmatprep.subr.mxu0 %v717
        %1098 = vmatpush1.msra.mxu0 %v716
        %1099 = vmatprep.subr.mxu0 %v720
        %1100 = vmatpush1.msra.mxu0 %v719
        %1101 = vmatprep.subr.mxu0 %v723
        %1102 = vmatpush1.msra.mxu0 %v722
        %1103 = vmatprep.subr.mxu0 %v726
        %1104 = vmatpush1.msra.mxu0 %v725
        %1105 = vmatprep.subr.mxu0 %v729
        %1106 = vmatpush1.msra.mxu0 %v728
        %1107 = vmatprep.subr.mxu0 0.0
        %1108 = vmatpush1.msra.mxu0 0.0
        %1109 = vmatprep.subr.mxu0 0.0
        %1110 = vmatpush1.msra.mxu0 0.0
        %1111 = vmatprep.subr.mxu0 0.0
        %1112 = vmatpush1.msra.mxu0 0.0
        %1113 = vmatprep.subr.mxu0 0.0
        %1114 = vmatpush1.msra.mxu0 0.0
        %1115 = vmatprep.subr.mxu0 0.0
        %1116 = vmatpush1.msra.mxu0 0.0
        %1117 = vmatprep.subr.mxu0 0.0
        %1118 = vmatpush1.msra.mxu0 0.0
        %1119 = vmatprep.subr.mxu0 0.0
        %1120 = vmatpush1.msra.mxu0 0.0
        %1121 = vmatprep.subr.mxu0 0.0
        %1122 = vmatpush1.msra.mxu0 0.0
        %1123 = vmatprep.subr.mxu0 0.0
        %1124 = vmatpush1.msra.mxu0 0.0
        %1125 = vmatprep.subr.mxu0 0.0
        %1126 = vmatpush1.msra.mxu0 0.0
        %1127 = vmatprep.subr.mxu0 0.0
        %1128 = vmatpush1.msra.mxu0 0.0
        %1129 = vmatprep.subr.mxu0 0.0
        %1130 = vmatpush1.msra.mxu0 0.0
        %1131 = vmatprep.subr.mxu0 0.0
        %1132 = vmatpush1.msra.mxu0 0.0
        %1133 = vmatprep.subr.mxu0 0.0
        %1134 = vmatpush1.msra.mxu0 0.0
        %1135 = vmatprep.subr.mxu0 0.0
        %1136 = vmatpush1.msra.mxu0 0.0
        %1137 = vmatprep.subr.mxu0 0.0
        %1138 = vmatpush1.msra.mxu0 0.0
        %1139 = vmatprep.mubr.f32.mxu0 0.0
        %1140 = vmatmul.mubr.f32.gmra.mrb[0].mxu0 %v853
        %v1141 = vpop.f32.mrb[0].mxu0
        %v1142 = vadd.f32 0.0, %v1141
        %v1143 = vpop.f32.mrb[0].mxu0
        %v1144 = vadd.f32 0.0, %v1143
        %1145 = vmatprep.mubr.f32.mxu0 0.0
        %1146 = vmatmul.mubr.f32.gmra.mrb[0].mxu0 %v926
        %v1147 = vpop.f32.mrb[0].mxu0
        %v1148 = vadd.f32 0.0, %v1147
        %v1149 = vpop.f32.mrb[0].mxu0
        %v1150 = vadd.f32 0.0, %v1149
        %1151 = vmatprep.mubr.f32.mxu0 0.0
        %1152 = vmatmul.mubr.f32.gmra.mrb[0].mxu0 %v999
        %v1153 = vpop.f32.mrb[0].mxu0
        %v1154 = vadd.f32 0.0, %v1153
        %v1155 = vpop.f32.mrb[0].mxu0
        %v1156 = vadd.f32 0.0, %v1155
        %1157 = vmatprep.mubr.f32.mxu0 0.0
        %1158 = vmatmul.mubr.f32.gmra.mrb[0].mxu0 %v1072
        %v1159 = vpop.f32.mrb[0].mxu0
        %v1160 = vadd.f32 0.0, %v1159
        %v1161 = vpop.f32.mrb[0].mxu0
        %v1162 = vadd.f32 0.0, %v1161
        %1163 = vdwg.mxu0
        %1164 = vmatprep.subr.mxu0 0.0
        %1165 = vmatpush1.msra.mxu0 %v685
        %1166 = vmatprep.subr.mxu0 0.0
        %1167 = vmatpush1.msra.mxu0 %v688
        %1168 = vmatprep.subr.mxu0 0.0
        %1169 = vmatpush1.msra.mxu0 %v691
        %1170 = vmatprep.subr.mxu0 0.0
        %1171 = vmatpush1.msra.mxu0 %v694
        %1172 = vmatprep.subr.mxu0 0.0
        %1173 = vmatpush1.msra.mxu0 %v697
        %1174 = vmatprep.subr.mxu0 0.0
        %1175 = vmatpush1.msra.mxu0 %v700
        %1176 = vmatprep.subr.mxu0 0.0
        %1177 = vmatpush1.msra.mxu0 %v703
        %1178 = vmatprep.subr.mxu0 0.0
        %1179 = vmatpush1.msra.mxu0 %v706
        %1180 = vmatprep.subr.mxu0 0.0
        %1181 = vmatpush1.msra.mxu0 %v709
        %1182 = vmatprep.subr.mxu0 0.0
        %1183 = vmatpush1.msra.mxu0 %v712
        %1184 = vmatprep.subr.mxu0 0.0
        %1185 = vmatpush1.msra.mxu0 %v715
        %1186 = vmatprep.subr.mxu0 0.0
        %1187 = vmatpush1.msra.mxu0 %v718
        %1188 = vmatprep.subr.mxu0 0.0
        %1189 = vmatpush1.msra.mxu0 %v721
        %1190 = vmatprep.subr.mxu0 0.0
        %1191 = vmatpush1.msra.mxu0 %v724
        %1192 = vmatprep.subr.mxu0 0.0
        %1193 = vmatpush1.msra.mxu0 %v727
        %1194 = vmatprep.subr.mxu0 0.0
        %1195 = vmatpush1.msra.mxu0 %v730
        %1196 = vmatprep.subr.mxu0 0.0
        %1197 = vmatpush1.msra.mxu0 0.0
        %1198 = vmatprep.subr.mxu0 0.0
        %1199 = vmatpush1.msra.mxu0 0.0
        %1200 = vmatprep.subr.mxu0 0.0
        %1201 = vmatpush1.msra.mxu0 0.0
        %1202 = vmatprep.subr.mxu0 0.0
        %1203 = vmatpush1.msra.mxu0 0.0
        %1204 = vmatprep.subr.mxu0 0.0
        %1205 = vmatpush1.msra.mxu0 0.0
        %1206 = vmatprep.subr.mxu0 0.0
        %1207 = vmatpush1.msra.mxu0 0.0
        %1208 = vmatprep.subr.mxu0 0.0
        %1209 = vmatpush1.msra.mxu0 0.0
        %1210 = vmatprep.subr.mxu0 0.0
        %1211 = vmatpush1.msra.mxu0 0.0
        %1212 = vmatprep.subr.mxu0 0.0
        %1213 = vmatpush1.msra.mxu0 0.0
        %1214 = vmatprep.subr.mxu0 0.0
        %1215 = vmatpush1.msra.mxu0 0.0
        %1216 = vmatprep.subr.mxu0 0.0
        %1217 = vmatpush1.msra.mxu0 0.0
        %1218 = vmatprep.subr.mxu0 0.0
        %1219 = vmatpush1.msra.mxu0 0.0
        %1220 = vmatprep.subr.mxu0 0.0
        %1221 = vmatpush1.msra.mxu0 0.0
        %1222 = vmatprep.subr.mxu0 0.0
        %1223 = vmatpush1.msra.mxu0 0.0
        %1224 = vmatprep.subr.mxu0 0.0
        %1225 = vmatpush1.msra.mxu0 0.0
        %1226 = vmatprep.subr.mxu0 0.0
        %1227 = vmatpush1.msra.mxu0 0.0
        %1228 = vmatprep.mubr.f32.mxu0 0.0
        %1229 = vmatmul.mubr.f32.gmra.mrb[0].mxu0 %v853
        %v1230 = vpop.f32.mrb[0].mxu0
        %v1231 = vadd.f32 0.0, %v1230
        %v1232 = vpop.f32.mrb[0].mxu0
        %1233 = vmatprep.mubr.f32.mxu0 0.0
        %1234 = vmatmul.mubr.f32.gmra.mrb[0].mxu0 %v926
        %v1235 = vpop.f32.mrb[0].mxu0
        %v1236 = vadd.f32 0.0, %v1235
        %v1237 = vpop.f32.mrb[0].mxu0
        %1238 = vmatprep.mubr.f32.mxu0 0.0
        %1239 = vmatmul.mubr.f32.gmra.mrb[0].mxu0 %v999
        %v1240 = vpop.f32.mrb[0].mxu0
        %v1241 = vadd.f32 0.0, %v1240
        %v1242 = vpop.f32.mrb[0].mxu0
        %1243 = vmatprep.mubr.f32.mxu0 0.0
        %1244 = vmatmul.mubr.f32.gmra.mrb[0].mxu0 %v1072
        %v1245 = vpop.f32.mrb[0].mxu0
        %v1246 = vadd.f32 0.0, %v1245
        %v1247 = vpop.f32.mrb[0].mxu0
        %1248 = vdwg.mxu0
        %1249 = vmatprep.subr.mxu0 %v732
        %1250 = vmatpush1.msra.mxu0 %v731
        %1251 = vmatprep.subr.mxu0 %v734
        %1252 = vmatpush1.msra.mxu0 %v733
        %1253 = vmatprep.subr.mxu0 %v736
        %1254 = vmatpush1.msra.mxu0 %v735
        %1255 = vmatprep.subr.mxu0 %v738
        %1256 = vmatpush1.msra.mxu0 %v737
        %1257 = vmatprep.subr.mxu0 %v740
        %1258 = vmatpush1.msra.mxu0 %v739
        %1259 = vmatprep.subr.mxu0 %v742
        %1260 = vmatpush1.msra.mxu0 %v741
        %1261 = vmatprep.subr.mxu0 %v744
        %1262 = vmatpush1.msra.mxu0 %v743
        %1263 = vmatprep.subr.mxu0 %v746
        %1264 = vmatpush1.msra.mxu0 %v745
        %1265 = vmatprep.subr.mxu0 %v748
        %1266 = vmatpush1.msra.mxu0 %v747
        %1267 = vmatprep.subr.mxu0 %v750
        %1268 = vmatpush1.msra.mxu0 %v749
        %1269 = vmatprep.subr.mxu0 %v752
        %1270 = vmatpush1.msra.mxu0 %v751
        %1271 = vmatprep.subr.mxu0 %v754
        %1272 = vmatpush1.msra.mxu0 %v753
        %1273 = vmatprep.subr.mxu0 %v756
        %1274 = vmatpush1.msra.mxu0 %v755
        %1275 = vmatprep.subr.mxu0 %v758
        %1276 = vmatpush1.msra.mxu0 %v757
        %1277 = vmatprep.subr.mxu0 %v760
        %1278 = vmatpush1.msra.mxu0 %v759
        %1279 = vmatprep.subr.mxu0 %v762
        %1280 = vmatpush1.msra.mxu0 %v761
        %1281 = vmatprep.subr.mxu0 0.0
        %1282 = vmatpush1.msra.mxu0 0.0
        %1283 = vmatprep.subr.mxu0 0.0
        %1284 = vmatpush1.msra.mxu0 0.0
        %1285 = vmatprep.subr.mxu0 0.0
        %1286 = vmatpush1.msra.mxu0 0.0
        %1287 = vmatprep.subr.mxu0 0.0
        %1288 = vmatpush1.msra.mxu0 0.0
        %1289 = vmatprep.subr.mxu0 0.0
        %1290 = vmatpush1.msra.mxu0 0.0
        %1291 = vmatprep.subr.mxu0 0.0
        %1292 = vmatpush1.msra.mxu0 0.0
        %1293 = vmatprep.subr.mxu0 0.0
        %1294 = vmatpush1.msra.mxu0 0.0
        %1295 = vmatprep.subr.mxu0 0.0
        %1296 = vmatpush1.msra.mxu0 0.0
        %1297 = vmatprep.subr.mxu0 0.0
        %1298 = vmatpush1.msra.mxu0 0.0
        %1299 = vmatprep.subr.mxu0 0.0
        %1300 = vmatpush1.msra.mxu0 0.0
        %1301 = vmatprep.subr.mxu0 0.0
        %1302 = vmatpush1.msra.mxu0 0.0
        %1303 = vmatprep.subr.mxu0 0.0
        %1304 = vmatpush1.msra.mxu0 0.0
        %1305 = vmatprep.subr.mxu0 0.0
        %1306 = vmatpush1.msra.mxu0 0.0
        %1307 = vmatprep.subr.mxu0 0.0
        %1308 = vmatpush1.msra.mxu0 0.0
        %1309 = vmatprep.subr.mxu0 0.0
        %1310 = vmatpush1.msra.mxu0 0.0
        %1311 = vmatprep.subr.mxu0 0.0
        %1312 = vmatpush1.msra.mxu0 0.0
        %1313 = vmatprep.mubr.f32.mxu0 0.0
        %1314 = vmatmul.mubr.f32.gmra.mrb[0].mxu0 %v679
        %v1315 = vpop.f32.mrb[0].mxu0
        %v1316 = vadd.f32 0.0, %v1315
        %v1317 = vpop.f32.mrb[0].mxu0
        %v1318 = vadd.f32 0.0, %v1317
        %1319 = vmatprep.mubr.f32.mxu0 0.0
        %1320 = vmatmul.mubr.f32.gmra.mrb[0].mxu0 %v680
        %v1321 = vpop.f32.mrb[0].mxu0
        %v1322 = vadd.f32 0.0, %v1321
        %v1323 = vpop.f32.mrb[0].mxu0
        %v1324 = vadd.f32 0.0, %v1323
        %1325 = vmatprep.mubr.f32.mxu0 0.0
        %1326 = vmatmul.mubr.f32.gmra.mrb[0].mxu0 %v681
        %v1327 = vpop.f32.mrb[0].mxu0
        %v1328 = vadd.f32 0.0, %v1327
        %v1329 = vpop.f32.mrb[0].mxu0
        %v1330 = vadd.f32 0.0, %v1329
        %1331 = vmatprep.mubr.f32.mxu0 0.0
        %1332 = vmatmul.mubr.f32.gmra.mrb[0].mxu0 %v682
        %v1333 = vpop.f32.mrb[0].mxu0
        %v1334 = vadd.f32 0.0, %v1333
        %v1335 = vpop.f32.mrb[0].mxu0
        %v1336 = vadd.f32 0.0, %v1335
        %1337 = vdwg.mxu0
        %v1338 = vadd.f32 %v1142, %v1316
        %v1339 = vadd.f32 %v1148, %v1322
        %v1340 = vadd.f32 %v1154, %v1328
        %v1341 = vadd.f32 %v1160, %v1334
        %v1343 = vlaneseq
        %v1344 = vshrl.u32 %v1343, 7
        %v1345 = vsub.s32 0, %v1344
        %v1346 = vrot.slane %v779, %v1345
        %v1348 = vadd.f32 %v1338, %v1346
        %v1349 = vadd.f32 %v1339, %v1346
        %v1350 = vadd.f32 %v1340, %v1346
        %v1351 = vadd.f32 %v1341, %v1346
        %v1352 = vsub.f32 0.0, %v1348
        %v1353 = vsub.f32 0.0, %v1349
        %v1354 = vsub.f32 0.0, %v1350
        %v1355 = vsub.f32 0.0, %v1351
        %v1356 = vmul.f32 %v1352, 1.442695
        %v1357 = vpow.pop %v1356
        %v1358 = vmul.f32 %v1353, 1.442695
        %v1359 = vpow.pop %v1358
        %v1360 = vmul.f32 %v1354, 1.442695
        %v1361 = vpow.pop %v1360
        %v1362 = vmul.f32 %v1355, 1.442695
        %v1363 = vpow.pop %v1362
        %v1364 = vadd.f32 %v1357, 1.0
        %v1365 = vadd.f32 %v1359, 1.0
        %v1366 = vadd.f32 %v1361, 1.0
        %v1367 = vadd.f32 %v1363, 1.0
        %v1368 = vrcp.pop %v1364
        %v1369 = vrcp.pop %v1365
        %v1370 = vrcp.pop %v1366
        %v1371 = vrcp.pop %v1367
        %v1372 = vadd.f32 %v1144, %v1318
        %v1373 = vadd.f32 %v1150, %v1324
        %v1374 = vadd.f32 %v1156, %v1330
        %v1375 = vadd.f32 %v1162, %v1336
        %v1377 = vlaneseq
        %v1378 = vshrl.u32 %v1377, 7
        %v1379 = vsub.s32 0, %v1378
        %v1380 = vrot.slane %v780, %v1379
        %v1382 = vadd.f32 %v1372, %v1380
        %v1383 = vadd.f32 %v1373, %v1380
        %v1384 = vadd.f32 %v1374, %v1380
        %v1385 = vadd.f32 %v1375, %v1380
        %v1386 = vsub.f32 0.0, %v1382
        %v1387 = vsub.f32 0.0, %v1383
        %v1388 = vsub.f32 0.0, %v1384
        %v1389 = vsub.f32 0.0, %v1385
        %v1390 = vmul.f32 %v1386, 1.442695
        %v1391 = vpow.pop %v1390
        %v1392 = vmul.f32 %v1387, 1.442695
        %v1393 = vpow.pop %v1392
        %v1394 = vmul.f32 %v1388, 1.442695
        %v1395 = vpow.pop %v1394
        %v1396 = vmul.f32 %v1389, 1.442695
        %v1397 = vpow.pop %v1396
        %v1398 = vadd.f32 %v1391, 1.0
        %v1399 = vadd.f32 %v1393, 1.0
        %v1400 = vadd.f32 %v1395, 1.0
        %v1401 = vadd.f32 %v1397, 1.0
        %v1402 = vrcp.pop %v1398
        %v1403 = vrcp.pop %v1399
        %v1404 = vrcp.pop %v1400
        %v1405 = vrcp.pop %v1401
        %v1406 = vmul.f32 %v1402, %v679
        %v1407 = vmul.f32 %v1403, %v680
        %v1408 = vmul.f32 %v1404, %v681
        %v1409 = vmul.f32 %v1405, %v682
        %1410 = vmatprep.subr.mxu0 0.0
        %1411 = vmatpush1.msra.mxu0 %v763
        %1412 = vmatprep.subr.mxu0 0.0
        %1413 = vmatpush1.msra.mxu0 %v764
        %1414 = vmatprep.subr.mxu0 0.0
        %1415 = vmatpush1.msra.mxu0 %v765
        %1416 = vmatprep.subr.mxu0 0.0
        %1417 = vmatpush1.msra.mxu0 %v766
        %1418 = vmatprep.subr.mxu0 0.0
        %1419 = vmatpush1.msra.mxu0 %v767
        %1420 = vmatprep.subr.mxu0 0.0
        %1421 = vmatpush1.msra.mxu0 %v768
        %1422 = vmatprep.subr.mxu0 0.0
        %1423 = vmatpush1.msra.mxu0 %v769
        %1424 = vmatprep.subr.mxu0 0.0
        %1425 = vmatpush1.msra.mxu0 %v770
        %1426 = vmatprep.subr.mxu0 0.0
        %1427 = vmatpush1.msra.mxu0 %v771
        %1428 = vmatprep.subr.mxu0 0.0
        %1429 = vmatpush1.msra.mxu0 %v772
        %1430 = vmatprep.subr.mxu0 0.0
        %1431 = vmatpush1.msra.mxu0 %v773
        %1432 = vmatprep.subr.mxu0 0.0
        %1433 = vmatpush1.msra.mxu0 %v774
        %1434 = vmatprep.subr.mxu0 0.0
        %1435 = vmatpush1.msra.mxu0 %v775
        %1436 = vmatprep.subr.mxu0 0.0
        %1437 = vmatpush1.msra.mxu0 %v776
        %1438 = vmatprep.subr.mxu0 0.0
        %1439 = vmatpush1.msra.mxu0 %v777
        %1440 = vmatprep.subr.mxu0 0.0
        %1441 = vmatpush1.msra.mxu0 %v778
        %1442 = vmatprep.subr.mxu0 0.0
        %1443 = vmatpush1.msra.mxu0 0.0
        %1444 = vmatprep.subr.mxu0 0.0
        %1445 = vmatpush1.msra.mxu0 0.0
        %1446 = vmatprep.subr.mxu0 0.0
        %1447 = vmatpush1.msra.mxu0 0.0
        %1448 = vmatprep.subr.mxu0 0.0
        %1449 = vmatpush1.msra.mxu0 0.0
        %1450 = vmatprep.subr.mxu0 0.0
        %1451 = vmatpush1.msra.mxu0 0.0
        %1452 = vmatprep.subr.mxu0 0.0
        %1453 = vmatpush1.msra.mxu0 0.0
        %1454 = vmatprep.subr.mxu0 0.0
        %1455 = vmatpush1.msra.mxu0 0.0
        %1456 = vmatprep.subr.mxu0 0.0
        %1457 = vmatpush1.msra.mxu0 0.0
        %1458 = vmatprep.subr.mxu0 0.0
        %1459 = vmatpush1.msra.mxu0 0.0
        %1460 = vmatprep.subr.mxu0 0.0
        %1461 = vmatpush1.msra.mxu0 0.0
        %1462 = vmatprep.subr.mxu0 0.0
        %1463 = vmatpush1.msra.mxu0 0.0
        %1464 = vmatprep.subr.mxu0 0.0
        %1465 = vmatpush1.msra.mxu0 0.0
        %1466 = vmatprep.subr.mxu0 0.0
        %1467 = vmatpush1.msra.mxu0 0.0
        %1468 = vmatprep.subr.mxu0 0.0
        %1469 = vmatpush1.msra.mxu0 0.0
        %1470 = vmatprep.subr.mxu0 0.0
        %1471 = vmatpush1.msra.mxu0 0.0
        %1472 = vmatprep.subr.mxu0 0.0
        %1473 = vmatpush1.msra.mxu0 0.0
        %1474 = vmatprep.mubr.f32.mxu0 0.0
        %1475 = vmatmul.mubr.f32.gmra.mrb[0].mxu0 %v1406
        %v1476 = vpop.f32.mrb[0].mxu0
        %v1477 = vadd.f32 0.0, %v1476
        %v1478 = vpop.f32.mrb[0].mxu0
        %1479 = vmatprep.mubr.f32.mxu0 0.0
        %1480 = vmatmul.mubr.f32.gmra.mrb[0].mxu0 %v1407
        %v1481 = vpop.f32.mrb[0].mxu0
        %v1482 = vadd.f32 0.0, %v1481
        %v1483 = vpop.f32.mrb[0].mxu0
        %1484 = vmatprep.mubr.f32.mxu0 0.0
        %1485 = vmatmul.mubr.f32.gmra.mrb[0].mxu0 %v1408
        %v1486 = vpop.f32.mrb[0].mxu0
        %v1487 = vadd.f32 0.0, %v1486
        %v1488 = vpop.f32.mrb[0].mxu0
        %1489 = vmatprep.mubr.f32.mxu0 0.0
        %1490 = vmatmul.mubr.f32.gmra.mrb[0].mxu0 %v1409
        %v1491 = vpop.f32.mrb[0].mxu0
        %v1492 = vadd.f32 0.0, %v1491
        %v1493 = vpop.f32.mrb[0].mxu0
        %1494 = vdwg.mxu0
        %v1495 = vadd.f32 %v1231, %v1477
        %v1496 = vadd.f32 %v1236, %v1482
        %v1497 = vadd.f32 %v1241, %v1487
        %v1498 = vadd.f32 %v1246, %v1492
        %v1500 = vlaneseq
        %v1501 = vshrl.u32 %v1500, 7
        %v1502 = vsub.s32 0, %v1501
        %v1503 = vrot.slane %v781, %v1502
        %v1505 = vadd.f32 %v1495, %v1503
        %v1506 = vadd.f32 %v1496, %v1503
        %v1507 = vadd.f32 %v1497, %v1503
        %v1508 = vadd.f32 %v1498, %v1503
        %v1509 = vmul.f32 %v662, %v1505
        %v1510 = vmul.f32 %v667, %v1506
        %v1511 = vmul.f32 %v672, %v1507
        %v1512 = vmul.f32 %v677, %v1508
        %vm1513 = vcmp.gt.f32.partialorder %v1509, 0.0
        %vm1514 = vcmp.gt.f32.partialorder %v1510, 0.0
        %vm1515 = vcmp.gt.f32.partialorder %v1511, 0.0
        %vm1516 = vcmp.gt.f32.partialorder %v1512, 0.0
        %v1517 = vmin.f32 %v1509, 0.0
        %v1518 = vmin.f32 %v1510, 0.0
        %v1519 = vmin.f32 %v1511, 0.0
        %v1520 = vmin.f32 %v1512, 0.0
        %v1521 = vmul.f32 %v1517, 1.442695
        %v1522 = vpow.pop %v1521
        %v1523 = vmul.f32 %v1518, 1.442695
        %v1524 = vpow.pop %v1523
        %v1525 = vmul.f32 %v1519, 1.442695
        %v1526 = vpow.pop %v1525
        %v1527 = vmul.f32 %v1520, 1.442695
        %v1528 = vpow.pop %v1527
        %v1529 = vsub.f32 %v1522, 1.0
        %v1530 = vsub.f32 %v1524, 1.0
        %v1531 = vsub.f32 %v1526, 1.0
        %v1532 = vsub.f32 %v1528, 1.0
        %v1533 = vsel %vm1513, %v1509, %v1529
        %v1534 = vsel %vm1514, %v1510, %v1530
        %v1535 = vsel %vm1515, %v1511, %v1531
        %v1536 = vsel %vm1516, %v1512, %v1532
        %v1537 = vmul.f32 %v1533, %v1368
        %v1538 = vmul.f32 %v1534, %v1369
        %v1539 = vmul.f32 %v1535, %v1370
        %v1540 = vmul.f32 %v1536, %v1371
        %v1541 = vsub.f32 1.0, %v1368
        %v1542 = vsub.f32 1.0, %v1369
        %v1543 = vsub.f32 1.0, %v1370
        %v1544 = vsub.f32 1.0, %v1371
        %v1545 = vmul.f32 %v679, %v1541
        %v1546 = vmul.f32 %v680, %v1542
        %v1547 = vmul.f32 %v681, %v1543
        %v1548 = vmul.f32 %v682, %v1544
        %v1549 = vadd.f32 %v1537, %v1545
        %v1550 = vadd.f32 %v1538, %v1546
        %v1551 = vadd.f32 %v1539, %v1547
        %v1552 = vadd.f32 %v1540, %v1548
        %1553 = vmatprep.subr.mxu0 0.0
        %1554 = vmatpush1.msra.mxu0 %v1549
        %1555 = vmatprep.subr.mxu0 0.0
        %1556 = vmatpush1.msra.mxu0 0.0
        %1557 = vmatprep.subr.mxu0 0.0
        %1558 = vmatpush1.msra.mxu0 0.0
        %1559 = vmatprep.subr.mxu0 0.0
        %1560 = vmatpush1.msra.mxu0 0.0
        %1561 = vmatprep.subr.mxu0 0.0
        %1562 = vmatpush1.msra.mxu0 0.0
        %1563 = vmatprep.subr.mxu0 0.0
        %1564 = vmatpush1.msra.mxu0 0.0
        %1565 = vmatprep.subr.mxu0 0.0
        %1566 = vmatpush1.msra.mxu0 0.0
        %1567 = vmatprep.subr.mxu0 0.0
        %1568 = vmatpush1.msra.mxu0 0.0
        %1569 = vmatprep.subr.mxu0 0.0
        %1570 = vmatpush1.msra.mxu0 0.0
        %1571 = vmatprep.subr.mxu0 0.0
        %1572 = vmatpush1.msra.mxu0 0.0
        %1573 = vmatprep.subr.mxu0 0.0
        %1574 = vmatpush1.msra.mxu0 0.0
        %1575 = vmatprep.subr.mxu0 0.0
        %1576 = vmatpush1.msra.mxu0 0.0
        %1577 = vmatprep.subr.mxu0 0.0
        %1578 = vmatpush1.msra.mxu0 0.0
        %1579 = vmatprep.subr.mxu0 0.0
        %1580 = vmatpush1.msra.mxu0 0.0
        %1581 = vmatprep.subr.mxu0 0.0
        %1582 = vmatpush1.msra.mxu0 0.0
        %1583 = vmatprep.subr.mxu0 0.0
        %1584 = vmatpush1.msra.mxu0 0.0
        %1585 = vmatprep.subr.mxu0 0.0
        %1586 = vmatpush1.msra.mxu0 0.0
        %1587 = vmatprep.subr.mxu0 0.0
        %1588 = vmatpush1.msra.mxu0 0.0
        %1589 = vmatprep.subr.mxu0 0.0
        %1590 = vmatpush1.msra.mxu0 0.0
        %1591 = vmatprep.subr.mxu0 0.0
        %1592 = vmatpush1.msra.mxu0 0.0
        %1593 = vmatprep.subr.mxu0 0.0
        %1594 = vmatpush1.msra.mxu0 0.0
        %1595 = vmatprep.subr.mxu0 0.0
        %1596 = vmatpush1.msra.mxu0 0.0
        %1597 = vmatprep.subr.mxu0 0.0
        %1598 = vmatpush1.msra.mxu0 0.0
        %1599 = vmatprep.subr.mxu0 0.0
        %1600 = vmatpush1.msra.mxu0 0.0
        %1601 = vmatprep.subr.mxu0 0.0
        %1602 = vmatpush1.msra.mxu0 0.0
        %1603 = vmatprep.subr.mxu0 0.0
        %1604 = vmatpush1.msra.mxu0 0.0
        %1605 = vmatprep.subr.mxu0 0.0
        %1606 = vmatpush1.msra.mxu0 0.0
        %1607 = vmatprep.subr.mxu0 0.0
        %1608 = vmatpush1.msra.mxu0 0.0
        %1609 = vmatprep.subr.mxu0 0.0
        %1610 = vmatpush1.msra.mxu0 0.0
        %1611 = vmatprep.subr.mxu0 0.0
        %1612 = vmatpush1.msra.mxu0 0.0
        %1613 = vmatprep.subr.mxu0 0.0
        %1614 = vmatpush1.msra.mxu0 0.0
        %1615 = vmatprep.subr.mxu0 0.0
        %1616 = vmatpush1.msra.mxu0 0.0
        %1617 = vmatprep.mubr.f32.mxu0 0.0
        %1618 = vmatmul.mubr.f32.gmra.mrb[0].mxu0 %v784
        %v1619 = vpop.f32.mrb[0].mxu0
        %v1620 = vadd.f32 0.0, %v1619
        %v1621 = vpop.f32.mrb[0].mxu0
        %1622 = vdwg.mxu0
        %1623 = vmatprep.subr.mxu0 0.0
        %1624 = vmatpush1.msra.mxu0 %v1550
        %1625 = vmatprep.subr.mxu0 0.0
        %1626 = vmatpush1.msra.mxu0 0.0
        %1627 = vmatprep.subr.mxu0 0.0
        %1628 = vmatpush1.msra.mxu0 0.0
        %1629 = vmatprep.subr.mxu0 0.0
        %1630 = vmatpush1.msra.mxu0 0.0
        %1631 = vmatprep.subr.mxu0 0.0
        %1632 = vmatpush1.msra.mxu0 0.0
        %1633 = vmatprep.subr.mxu0 0.0
        %1634 = vmatpush1.msra.mxu0 0.0
        %1635 = vmatprep.subr.mxu0 0.0
        %1636 = vmatpush1.msra.mxu0 0.0
        %1637 = vmatprep.subr.mxu0 0.0
        %1638 = vmatpush1.msra.mxu0 0.0
        %1639 = vmatprep.subr.mxu0 0.0
        %1640 = vmatpush1.msra.mxu0 0.0
        %1641 = vmatprep.subr.mxu0 0.0
        %1642 = vmatpush1.msra.mxu0 0.0
        %1643 = vmatprep.subr.mxu0 0.0
        %1644 = vmatpush1.msra.mxu0 0.0
        %1645 = vmatprep.subr.mxu0 0.0
        %1646 = vmatpush1.msra.mxu0 0.0
        %1647 = vmatprep.subr.mxu0 0.0
        %1648 = vmatpush1.msra.mxu0 0.0
        %1649 = vmatprep.subr.mxu0 0.0
        %1650 = vmatpush1.msra.mxu0 0.0
        %1651 = vmatprep.subr.mxu0 0.0
        %1652 = vmatpush1.msra.mxu0 0.0
        %1653 = vmatprep.subr.mxu0 0.0
        %1654 = vmatpush1.msra.mxu0 0.0
        %1655 = vmatprep.subr.mxu0 0.0
        %1656 = vmatpush1.msra.mxu0 0.0
        %1657 = vmatprep.subr.mxu0 0.0
        %1658 = vmatpush1.msra.mxu0 0.0
        %1659 = vmatprep.subr.mxu0 0.0
        %1660 = vmatpush1.msra.mxu0 0.0
        %1661 = vmatprep.subr.mxu0 0.0
        %1662 = vmatpush1.msra.mxu0 0.0
        %1663 = vmatprep.subr.mxu0 0.0
        %1664 = vmatpush1.msra.mxu0 0.0
        %1665 = vmatprep.subr.mxu0 0.0
        %1666 = vmatpush1.msra.mxu0 0.0
        %1667 = vmatprep.subr.mxu0 0.0
        %1668 = vmatpush1.msra.mxu0 0.0
        %1669 = vmatprep.subr.mxu0 0.0
        %1670 = vmatpush1.msra.mxu0 0.0
        %1671 = vmatprep.subr.mxu0 0.0
        %1672 = vmatpush1.msra.mxu0 0.0
        %1673 = vmatprep.subr.mxu0 0.0
        %1674 = vmatpush1.msra.mxu0 0.0
        %1675 = vmatprep.subr.mxu0 0.0
        %1676 = vmatpush1.msra.mxu0 0.0
        %1677 = vmatprep.subr.mxu0 0.0
        %1678 = vmatpush1.msra.mxu0 0.0
        %1679 = vmatprep.subr.mxu0 0.0
        %1680 = vmatpush1.msra.mxu0 0.0
        %1681 = vmatprep.subr.mxu0 0.0
        %1682 = vmatpush1.msra.mxu0 0.0
        %1683 = vmatprep.subr.mxu0 0.0
        %1684 = vmatpush1.msra.mxu0 0.0
        %1685 = vmatprep.subr.mxu0 0.0
        %1686 = vmatpush1.msra.mxu0 0.0
        %1687 = vmatprep.mubr.f32.mxu0 0.0
        %1688 = vmatmul.mubr.f32.gmra.mrb[0].mxu0 %v857
        %v1689 = vpop.f32.mrb[0].mxu0
        %v1690 = vadd.f32 0.0, %v1689
        %v1691 = vpop.f32.mrb[0].mxu0
        %1692 = vdwg.mxu0
        %1693 = vmatprep.subr.mxu0 0.0
        %1694 = vmatpush1.msra.mxu0 %v1551
        %1695 = vmatprep.subr.mxu0 0.0
        %1696 = vmatpush1.msra.mxu0 0.0
        %1697 = vmatprep.subr.mxu0 0.0
        %1698 = vmatpush1.msra.mxu0 0.0
        %1699 = vmatprep.subr.mxu0 0.0
        %1700 = vmatpush1.msra.mxu0 0.0
        %1701 = vmatprep.subr.mxu0 0.0
        %1702 = vmatpush1.msra.mxu0 0.0
        %1703 = vmatprep.subr.mxu0 0.0
        %1704 = vmatpush1.msra.mxu0 0.0
        %1705 = vmatprep.subr.mxu0 0.0
        %1706 = vmatpush1.msra.mxu0 0.0
        %1707 = vmatprep.subr.mxu0 0.0
        %1708 = vmatpush1.msra.mxu0 0.0
        %1709 = vmatprep.subr.mxu0 0.0
        %1710 = vmatpush1.msra.mxu0 0.0
        %1711 = vmatprep.subr.mxu0 0.0
        %1712 = vmatpush1.msra.mxu0 0.0
        %1713 = vmatprep.subr.mxu0 0.0
        %1714 = vmatpush1.msra.mxu0 0.0
        %1715 = vmatprep.subr.mxu0 0.0
        %1716 = vmatpush1.msra.mxu0 0.0
        %1717 = vmatprep.subr.mxu0 0.0
        %1718 = vmatpush1.msra.mxu0 0.0
        %1719 = vmatprep.subr.mxu0 0.0
        %1720 = vmatpush1.msra.mxu0 0.0
        %1721 = vmatprep.subr.mxu0 0.0
        %1722 = vmatpush1.msra.mxu0 0.0
        %1723 = vmatprep.subr.mxu0 0.0
        %1724 = vmatpush1.msra.mxu0 0.0
        %1725 = vmatprep.subr.mxu0 0.0
        %1726 = vmatpush1.msra.mxu0 0.0
        %1727 = vmatprep.subr.mxu0 0.0
        %1728 = vmatpush1.msra.mxu0 0.0
        %1729 = vmatprep.subr.mxu0 0.0
        %1730 = vmatpush1.msra.mxu0 0.0
        %1731 = vmatprep.subr.mxu0 0.0
        %1732 = vmatpush1.msra.mxu0 0.0
        %1733 = vmatprep.subr.mxu0 0.0
        %1734 = vmatpush1.msra.mxu0 0.0
        %1735 = vmatprep.subr.mxu0 0.0
        %1736 = vmatpush1.msra.mxu0 0.0
        %1737 = vmatprep.subr.mxu0 0.0
        %1738 = vmatpush1.msra.mxu0 0.0
        %1739 = vmatprep.subr.mxu0 0.0
        %1740 = vmatpush1.msra.mxu0 0.0
        %1741 = vmatprep.subr.mxu0 0.0
        %1742 = vmatpush1.msra.mxu0 0.0
        %1743 = vmatprep.subr.mxu0 0.0
        %1744 = vmatpush1.msra.mxu0 0.0
        %1745 = vmatprep.subr.mxu0 0.0
        %1746 = vmatpush1.msra.mxu0 0.0
        %1747 = vmatprep.subr.mxu0 0.0
        %1748 = vmatpush1.msra.mxu0 0.0
        %1749 = vmatprep.subr.mxu0 0.0
        %1750 = vmatpush1.msra.mxu0 0.0
        %1751 = vmatprep.subr.mxu0 0.0
        %1752 = vmatpush1.msra.mxu0 0.0
        %1753 = vmatprep.subr.mxu0 0.0
        %1754 = vmatpush1.msra.mxu0 0.0
        %1755 = vmatprep.subr.mxu0 0.0
        %1756 = vmatpush1.msra.mxu0 0.0
        %1757 = vmatprep.mubr.f32.mxu0 0.0
        %1758 = vmatmul.mubr.f32.gmra.mrb[0].mxu0 %v930
        %v1759 = vpop.f32.mrb[0].mxu0
        %v1760 = vadd.f32 0.0, %v1759
        %v1761 = vpop.f32.mrb[0].mxu0
        %1762 = vdwg.mxu0
        %1763 = vmatprep.subr.mxu0 0.0
        %1764 = vmatpush1.msra.mxu0 %v1552
        %1765 = vmatprep.subr.mxu0 0.0
        %1766 = vmatpush1.msra.mxu0 0.0
        %1767 = vmatprep.subr.mxu0 0.0
        %1768 = vmatpush1.msra.mxu0 0.0
        %1769 = vmatprep.subr.mxu0 0.0
        %1770 = vmatpush1.msra.mxu0 0.0
        %1771 = vmatprep.subr.mxu0 0.0
        %1772 = vmatpush1.msra.mxu0 0.0
        %1773 = vmatprep.subr.mxu0 0.0
        %1774 = vmatpush1.msra.mxu0 0.0
        %1775 = vmatprep.subr.mxu0 0.0
        %1776 = vmatpush1.msra.mxu0 0.0
        %1777 = vmatprep.subr.mxu0 0.0
        %1778 = vmatpush1.msra.mxu0 0.0
        %1779 = vmatprep.subr.mxu0 0.0
        %1780 = vmatpush1.msra.mxu0 0.0
        %1781 = vmatprep.subr.mxu0 0.0
        %1782 = vmatpush1.msra.mxu0 0.0
        %1783 = vmatprep.subr.mxu0 0.0
        %1784 = vmatpush1.msra.mxu0 0.0
        %1785 = vmatprep.subr.mxu0 0.0
        %1786 = vmatpush1.msra.mxu0 0.0
        %1787 = vmatprep.subr.mxu0 0.0
        %1788 = vmatpush1.msra.mxu0 0.0
        %1789 = vmatprep.subr.mxu0 0.0
        %1790 = vmatpush1.msra.mxu0 0.0
        %1791 = vmatprep.subr.mxu0 0.0
        %1792 = vmatpush1.msra.mxu0 0.0
        %1793 = vmatprep.subr.mxu0 0.0
        %1794 = vmatpush1.msra.mxu0 0.0
        %1795 = vmatprep.subr.mxu0 0.0
        %1796 = vmatpush1.msra.mxu0 0.0
        %1797 = vmatprep.subr.mxu0 0.0
        %1798 = vmatpush1.msra.mxu0 0.0
        %1799 = vmatprep.subr.mxu0 0.0
        %1800 = vmatpush1.msra.mxu0 0.0
        %1801 = vmatprep.subr.mxu0 0.0
        %1802 = vmatpush1.msra.mxu0 0.0
        %1803 = vmatprep.subr.mxu0 0.0
        %1804 = vmatpush1.msra.mxu0 0.0
        %1805 = vmatprep.subr.mxu0 0.0
        %1806 = vmatpush1.msra.mxu0 0.0
        %1807 = vmatprep.subr.mxu0 0.0
        %1808 = vmatpush1.msra.mxu0 0.0
        %1809 = vmatprep.subr.mxu0 0.0
        %1810 = vmatpush1.msra.mxu0 0.0
        %1811 = vmatprep.subr.mxu0 0.0
        %1812 = vmatpush1.msra.mxu0 0.0
        %1813 = vmatprep.subr.mxu0 0.0
        %1814 = vmatpush1.msra.mxu0 0.0
        %1815 = vmatprep.subr.mxu0 0.0
        %1816 = vmatpush1.msra.mxu0 0.0
        %1817 = vmatprep.subr.mxu0 0.0
        %1818 = vmatpush1.msra.mxu0 0.0
        %1819 = vmatprep.subr.mxu0 0.0
        %1820 = vmatpush1.msra.mxu0 0.0
        %1821 = vmatprep.subr.mxu0 0.0
        %1822 = vmatpush1.msra.mxu0 0.0
        %1823 = vmatprep.subr.mxu0 0.0
        %1824 = vmatpush1.msra.mxu0 0.0
        %1825 = vmatprep.subr.mxu0 0.0
        %1826 = vmatpush1.msra.mxu0 0.0
        %1827 = vmatprep.mubr.f32.mxu0 0.0
        %1828 = vmatmul.mubr.f32.gmra.mrb[0].mxu0 %v1003
        %v1829 = vpop.f32.mrb[0].mxu0
        %v1830 = vadd.f32 0.0, %v1829
        %v1831 = vpop.f32.mrb[0].mxu0
        %1832 = vdwg.mxu0
        %1833 = vmatprep.subr.mxu0 %v684
        %1834 = vmatpush1.msra.mxu0 %v683
        %1835 = vmatprep.subr.mxu0 %v687
        %1836 = vmatpush1.msra.mxu0 %v686
        %1837 = vmatprep.subr.mxu0 %v690
        %1838 = vmatpush1.msra.mxu0 %v689
        %1839 = vmatprep.subr.mxu0 %v693
        %1840 = vmatpush1.msra.mxu0 %v692
        %1841 = vmatprep.subr.mxu0 %v696
        %1842 = vmatpush1.msra.mxu0 %v695
        %1843 = vmatprep.subr.mxu0 %v699
        %1844 = vmatpush1.msra.mxu0 %v698
        %1845 = vmatprep.subr.mxu0 %v702
        %1846 = vmatpush1.msra.mxu0 %v701
        %1847 = vmatprep.subr.mxu0 %v705
        %1848 = vmatpush1.msra.mxu0 %v704
        %1849 = vmatprep.subr.mxu0 %v708
        %1850 = vmatpush1.msra.mxu0 %v707
        %1851 = vmatprep.subr.mxu0 %v711
        %1852 = vmatpush1.msra.mxu0 %v710
        %1853 = vmatprep.subr.mxu0 %v714
        %1854 = vmatpush1.msra.mxu0 %v713
        %1855 = vmatprep.subr.mxu0 %v717
        %1856 = vmatpush1.msra.mxu0 %v716
        %1857 = vmatprep.subr.mxu0 %v720
        %1858 = vmatpush1.msra.mxu0 %v719
        %1859 = vmatprep.subr.mxu0 %v723
        %1860 = vmatpush1.msra.mxu0 %v722
        %1861 = vmatprep.subr.mxu0 %v726
        %1862 = vmatpush1.msra.mxu0 %v725
        %1863 = vmatprep.subr.mxu0 %v729
        %1864 = vmatpush1.msra.mxu0 %v728
        %1865 = vmatprep.subr.mxu0 0.0
        %1866 = vmatpush1.msra.mxu0 0.0
        %1867 = vmatprep.subr.mxu0 0.0
        %1868 = vmatpush1.msra.mxu0 0.0
        %1869 = vmatprep.subr.mxu0 0.0
        %1870 = vmatpush1.msra.mxu0 0.0
        %1871 = vmatprep.subr.mxu0 0.0
        %1872 = vmatpush1.msra.mxu0 0.0
        %1873 = vmatprep.subr.mxu0 0.0
        %1874 = vmatpush1.msra.mxu0 0.0
        %1875 = vmatprep.subr.mxu0 0.0
        %1876 = vmatpush1.msra.mxu0 0.0
        %1877 = vmatprep.subr.mxu0 0.0
        %1878 = vmatpush1.msra.mxu0 0.0
        %1879 = vmatprep.subr.mxu0 0.0
        %1880 = vmatpush1.msra.mxu0 0.0
        %1881 = vmatprep.subr.mxu0 0.0
        %1882 = vmatpush1.msra.mxu0 0.0
        %1883 = vmatprep.subr.mxu0 0.0
        %1884 = vmatpush1.msra.mxu0 0.0
        %1885 = vmatprep.subr.mxu0 0.0
        %1886 = vmatpush1.msra.mxu0 0.0
        %1887 = vmatprep.subr.mxu0 0.0
        %1888 = vmatpush1.msra.mxu0 0.0
        %1889 = vmatprep.subr.mxu0 0.0
        %1890 = vmatpush1.msra.mxu0 0.0
        %1891 = vmatprep.subr.mxu0 0.0
        %1892 = vmatpush1.msra.mxu0 0.0
        %1893 = vmatprep.subr.mxu0 0.0
        %1894 = vmatpush1.msra.mxu0 0.0
        %1895 = vmatprep.subr.mxu0 0.0
        %1896 = vmatpush1.msra.mxu0 0.0
        %1897 = vmatprep.mubr.f32.mxu0 0.0
        %1898 = vmatmul.mubr.f32.gmra.mrb[0].mxu0 %v1620
        %v1899 = vpop.f32.mrb[0].mxu0
        %v1900 = vadd.f32 0.0, %v1899
        %v1901 = vpop.f32.mrb[0].mxu0
        %v1902 = vadd.f32 0.0, %v1901
        %1903 = vmatprep.mubr.f32.mxu0 0.0
        %1904 = vmatmul.mubr.f32.gmra.mrb[0].mxu0 %v1690
        %v1905 = vpop.f32.mrb[0].mxu0
        %v1906 = vadd.f32 0.0, %v1905
        %v1907 = vpop.f32.mrb[0].mxu0
        %v1908 = vadd.f32 0.0, %v1907
        %1909 = vmatprep.mubr.f32.mxu0 0.0
        %1910 = vmatmul.mubr.f32.gmra.mrb[0].mxu0 %v1760
        %v1911 = vpop.f32.mrb[0].mxu0
        %v1912 = vadd.f32 0.0, %v1911
        %v1913 = vpop.f32.mrb[0].mxu0
        %v1914 = vadd.f32 0.0, %v1913
        %1915 = vmatprep.mubr.f32.mxu0 0.0
        %1916 = vmatmul.mubr.f32.gmra.mrb[0].mxu0 %v1830
        %v1917 = vpop.f32.mrb[0].mxu0
        %v1918 = vadd.f32 0.0, %v1917
        %v1919 = vpop.f32.mrb[0].mxu0
        %v1920 = vadd.f32 0.0, %v1919
        %1921 = vdwg.mxu0
        %1922 = vmatprep.subr.mxu0 0.0
        %1923 = vmatpush1.msra.mxu0 %v685
        %1924 = vmatprep.subr.mxu0 0.0
        %1925 = vmatpush1.msra.mxu0 %v688
        %1926 = vmatprep.subr.mxu0 0.0
        %1927 = vmatpush1.msra.mxu0 %v691
        %1928 = vmatprep.subr.mxu0 0.0
        %1929 = vmatpush1.msra.mxu0 %v694
        %1930 = vmatprep.subr.mxu0 0.0
        %1931 = vmatpush1.msra.mxu0 %v697
        %1932 = vmatprep.subr.mxu0 0.0
        %1933 = vmatpush1.msra.mxu0 %v700
        %1934 = vmatprep.subr.mxu0 0.0
        %1935 = vmatpush1.msra.mxu0 %v703
        %1936 = vmatprep.subr.mxu0 0.0
        %1937 = vmatpush1.msra.mxu0 %v706
        %1938 = vmatprep.subr.mxu0 0.0
        %1939 = vmatpush1.msra.mxu0 %v709
        %1940 = vmatprep.subr.mxu0 0.0
        %1941 = vmatpush1.msra.mxu0 %v712
        %1942 = vmatprep.subr.mxu0 0.0
        %1943 = vmatpush1.msra.mxu0 %v715
        %1944 = vmatprep.subr.mxu0 0.0
        %1945 = vmatpush1.msra.mxu0 %v718
        %1946 = vmatprep.subr.mxu0 0.0
        %1947 = vmatpush1.msra.mxu0 %v721
        %1948 = vmatprep.subr.mxu0 0.0
        %1949 = vmatpush1.msra.mxu0 %v724
        %1950 = vmatprep.subr.mxu0 0.0
        %1951 = vmatpush1.msra.mxu0 %v727
        %1952 = vmatprep.subr.mxu0 0.0
        %1953 = vmatpush1.msra.mxu0 %v730
        %1954 = vmatprep.subr.mxu0 0.0
        %1955 = vmatpush1.msra.mxu0 0.0
        %1956 = vmatprep.subr.mxu0 0.0
        %1957 = vmatpush1.msra.mxu0 0.0
        %1958 = vmatprep.subr.mxu0 0.0
        %1959 = vmatpush1.msra.mxu0 0.0
        %1960 = vmatprep.subr.mxu0 0.0
        %1961 = vmatpush1.msra.mxu0 0.0
        %1962 = vmatprep.subr.mxu0 0.0
        %1963 = vmatpush1.msra.mxu0 0.0
        %1964 = vmatprep.subr.mxu0 0.0
        %1965 = vmatpush1.msra.mxu0 0.0
        %1966 = vmatprep.subr.mxu0 0.0
        %1967 = vmatpush1.msra.mxu0 0.0
        %1968 = vmatprep.subr.mxu0 0.0
        %1969 = vmatpush1.msra.mxu0 0.0
        %1970 = vmatprep.subr.mxu0 0.0
        %1971 = vmatpush1.msra.mxu0 0.0
        %1972 = vmatprep.subr.mxu0 0.0
        %1973 = vmatpush1.msra.mxu0 0.0
        %1974 = vmatprep.subr.mxu0 0.0
        %1975 = vmatpush1.msra.mxu0 0.0
        %1976 = vmatprep.subr.mxu0 0.0
        %1977 = vmatpush1.msra.mxu0 0.0
        %1978 = vmatprep.subr.mxu0 0.0
        %1979 = vmatpush1.msra.mxu0 0.0
        %1980 = vmatprep.subr.mxu0 0.0
        %1981 = vmatpush1.msra.mxu0 0.0
        %1982 = vmatprep.subr.mxu0 0.0
        %1983 = vmatpush1.msra.mxu0 0.0
        %1984 = vmatprep.subr.mxu0 0.0
        %1985 = vmatpush1.msra.mxu0 0.0
        %1986 = vmatprep.mubr.f32.mxu0 0.0
        %1987 = vmatmul.mubr.f32.gmra.mrb[0].mxu0 %v1620
        %v1988 = vpop.f32.mrb[0].mxu0
        %v1989 = vadd.f32 0.0, %v1988
        %v1990 = vpop.f32.mrb[0].mxu0
        %1991 = vmatprep.mubr.f32.mxu0 0.0
        %1992 = vmatmul.mubr.f32.gmra.mrb[0].mxu0 %v1690
        %v1993 = vpop.f32.mrb[0].mxu0
        %v1994 = vadd.f32 0.0, %v1993
        %v1995 = vpop.f32.mrb[0].mxu0
        %1996 = vmatprep.mubr.f32.mxu0 0.0
        %1997 = vmatmul.mubr.f32.gmra.mrb[0].mxu0 %v1760
        %v1998 = vpop.f32.mrb[0].mxu0
        %v1999 = vadd.f32 0.0, %v1998
        %v2000 = vpop.f32.mrb[0].mxu0
        %2001 = vmatprep.mubr.f32.mxu0 0.0
        %2002 = vmatmul.mubr.f32.gmra.mrb[0].mxu0 %v1830
        %v2003 = vpop.f32.mrb[0].mxu0
        %v2004 = vadd.f32 0.0, %v2003
        %v2005 = vpop.f32.mrb[0].mxu0
        %2006 = vdwg.mxu0
        %2007 = vmatprep.subr.mxu0 %v732
        %2008 = vmatpush1.msra.mxu0 %v731
        %2009 = vmatprep.subr.mxu0 %v734
        %2010 = vmatpush1.msra.mxu0 %v733
        %2011 = vmatprep.subr.mxu0 %v736
        %2012 = vmatpush1.msra.mxu0 %v735
        %2013 = vmatprep.subr.mxu0 %v738
        %2014 = vmatpush1.msra.mxu0 %v737
        %2015 = vmatprep.subr.mxu0 %v740
        %2016 = vmatpush1.msra.mxu0 %v739
        %2017 = vmatprep.subr.mxu0 %v742
        %2018 = vmatpush1.msra.mxu0 %v741
        %2019 = vmatprep.subr.mxu0 %v744
        %2020 = vmatpush1.msra.mxu0 %v743
        %2021 = vmatprep.subr.mxu0 %v746
        %2022 = vmatpush1.msra.mxu0 %v745
        %2023 = vmatprep.subr.mxu0 %v748
        %2024 = vmatpush1.msra.mxu0 %v747
        %2025 = vmatprep.subr.mxu0 %v750
        %2026 = vmatpush1.msra.mxu0 %v749
        %2027 = vmatprep.subr.mxu0 %v752
        %2028 = vmatpush1.msra.mxu0 %v751
        %2029 = vmatprep.subr.mxu0 %v754
        %2030 = vmatpush1.msra.mxu0 %v753
        %2031 = vmatprep.subr.mxu0 %v756
        %2032 = vmatpush1.msra.mxu0 %v755
        %2033 = vmatprep.subr.mxu0 %v758
        %2034 = vmatpush1.msra.mxu0 %v757
        %2035 = vmatprep.subr.mxu0 %v760
        %2036 = vmatpush1.msra.mxu0 %v759
        %2037 = vmatprep.subr.mxu0 %v762
        %2038 = vmatpush1.msra.mxu0 %v761
        %2039 = vmatprep.subr.mxu0 0.0
        %2040 = vmatpush1.msra.mxu0 0.0
        %2041 = vmatprep.subr.mxu0 0.0
        %2042 = vmatpush1.msra.mxu0 0.0
        %2043 = vmatprep.subr.mxu0 0.0
        %2044 = vmatpush1.msra.mxu0 0.0
        %2045 = vmatprep.subr.mxu0 0.0
        %2046 = vmatpush1.msra.mxu0 0.0
        %2047 = vmatprep.subr.mxu0 0.0
        %2048 = vmatpush1.msra.mxu0 0.0
        %2049 = vmatprep.subr.mxu0 0.0
        %2050 = vmatpush1.msra.mxu0 0.0
        %2051 = vmatprep.subr.mxu0 0.0
        %2052 = vmatpush1.msra.mxu0 0.0
        %2053 = vmatprep.subr.mxu0 0.0
        %2054 = vmatpush1.msra.mxu0 0.0
        %2055 = vmatprep.subr.mxu0 0.0
        %2056 = vmatpush1.msra.mxu0 0.0
        %2057 = vmatprep.subr.mxu0 0.0
        %2058 = vmatpush1.msra.mxu0 0.0
        %2059 = vmatprep.subr.mxu0 0.0
        %2060 = vmatpush1.msra.mxu0 0.0
        %2061 = vmatprep.subr.mxu0 0.0
        %2062 = vmatpush1.msra.mxu0 0.0
        %2063 = vmatprep.subr.mxu0 0.0
        %2064 = vmatpush1.msra.mxu0 0.0
        %2065 = vmatprep.subr.mxu0 0.0
        %2066 = vmatpush1.msra.mxu0 0.0
        %2067 = vmatprep.subr.mxu0 0.0
        %2068 = vmatpush1.msra.mxu0 0.0
        %2069 = vmatprep.subr.mxu0 0.0
        %2070 = vmatpush1.msra.mxu0 0.0
        %2071 = vmatprep.mubr.f32.mxu0 0.0
        %2072 = vmatmul.mubr.f32.gmra.mrb[0].mxu0 %v1549
        %v2073 = vpop.f32.mrb[0].mxu0
        %v2074 = vadd.f32 0.0, %v2073
        %v2075 = vpop.f32.mrb[0].mxu0
        %v2076 = vadd.f32 0.0, %v2075
        %2077 = vmatprep.mubr.f32.mxu0 0.0
        %2078 = vmatmul.mubr.f32.gmra.mrb[0].mxu0 %v1550
        %v2079 = vpop.f32.mrb[0].mxu0
        %v2080 = vadd.f32 0.0, %v2079
        %v2081 = vpop.f32.mrb[0].mxu0
        %v2082 = vadd.f32 0.0, %v2081
        %2083 = vmatprep.mubr.f32.mxu0 0.0
        %2084 = vmatmul.mubr.f32.gmra.mrb[0].mxu0 %v1551
        %v2085 = vpop.f32.mrb[0].mxu0
        %v2086 = vadd.f32 0.0, %v2085
        %v2087 = vpop.f32.mrb[0].mxu0
        %v2088 = vadd.f32 0.0, %v2087
        %2089 = vmatprep.mubr.f32.mxu0 0.0
        %2090 = vmatmul.mubr.f32.gmra.mrb[0].mxu0 %v1552
        %v2091 = vpop.f32.mrb[0].mxu0
        %v2092 = vadd.f32 0.0, %v2091
        %v2093 = vpop.f32.mrb[0].mxu0
        %v2094 = vadd.f32 0.0, %v2093
        %2095 = vdwg.mxu0
        %v2096 = vadd.f32 %v1900, %v2074
        %v2097 = vadd.f32 %v1906, %v2080
        %v2098 = vadd.f32 %v1912, %v2086
        %v2099 = vadd.f32 %v1918, %v2092
        %v2100 = vadd.f32 %v2096, %v1346
        %v2101 = vadd.f32 %v2097, %v1346
        %v2102 = vadd.f32 %v2098, %v1346
        %v2103 = vadd.f32 %v2099, %v1346
        %v2104 = vsub.f32 0.0, %v2100
        %v2105 = vsub.f32 0.0, %v2101
        %v2106 = vsub.f32 0.0, %v2102
        %v2107 = vsub.f32 0.0, %v2103
        %v2108 = vmul.f32 %v2104, 1.442695
        %v2109 = vpow.pop %v2108
        %v2110 = vmul.f32 %v2105, 1.442695
        %v2111 = vpow.pop %v2110
        %v2112 = vmul.f32 %v2106, 1.442695
        %v2113 = vpow.pop %v2112
        %v2114 = vmul.f32 %v2107, 1.442695
        %v2115 = vpow.pop %v2114
        %v2116 = vadd.f32 %v2109, 1.0
        %v2117 = vadd.f32 %v2111, 1.0
        %v2118 = vadd.f32 %v2113, 1.0
        %v2119 = vadd.f32 %v2115, 1.0
        %v2120 = vrcp.pop %v2116
        %v2121 = vrcp.pop %v2117
        %v2122 = vrcp.pop %v2118
        %v2123 = vrcp.pop %v2119
        %v2124 = vadd.f32 %v1902, %v2076
        %v2125 = vadd.f32 %v1908, %v2082
        %v2126 = vadd.f32 %v1914, %v2088
        %v2127 = vadd.f32 %v1920, %v2094
        %v2128 = vadd.f32 %v2124, %v1380
        %v2129 = vadd.f32 %v2125, %v1380
        %v2130 = vadd.f32 %v2126, %v1380
        %v2131 = vadd.f32 %v2127, %v1380
        %v2132 = vsub.f32 0.0, %v2128
        %v2133 = vsub.f32 0.0, %v2129
        %v2134 = vsub.f32 0.0, %v2130
        %v2135 = vsub.f32 0.0, %v2131
        %v2136 = vmul.f32 %v2132, 1.442695
        %v2137 = vpow.pop %v2136
        %v2138 = vmul.f32 %v2133, 1.442695
        %v2139 = vpow.pop %v2138
        %v2140 = vmul.f32 %v2134, 1.442695
        %v2141 = vpow.pop %v2140
        %v2142 = vmul.f32 %v2135, 1.442695
        %v2143 = vpow.pop %v2142
        %v2144 = vadd.f32 %v2137, 1.0
        %v2145 = vadd.f32 %v2139, 1.0
        %v2146 = vadd.f32 %v2141, 1.0
        %v2147 = vadd.f32 %v2143, 1.0
        %v2148 = vrcp.pop %v2144
        %v2149 = vrcp.pop %v2145
        %v2150 = vrcp.pop %v2146
        %v2151 = vrcp.pop %v2147
        %v2152 = vmul.f32 %v2148, %v1549
        %v2153 = vmul.f32 %v2149, %v1550
        %v2154 = vmul.f32 %v2150, %v1551
        %v2155 = vmul.f32 %v2151, %v1552
        %2156 = vmatprep.subr.mxu0 0.0
        %2157 = vmatpush1.msra.mxu0 %v763
        %2158 = vmatprep.subr.mxu0 0.0
        %2159 = vmatpush1.msra.mxu0 %v764
        %2160 = vmatprep.subr.mxu0 0.0
        %2161 = vmatpush1.msra.mxu0 %v765
        %2162 = vmatprep.subr.mxu0 0.0
        %2163 = vmatpush1.msra.mxu0 %v766
        %2164 = vmatprep.subr.mxu0 0.0
        %2165 = vmatpush1.msra.mxu0 %v767
        %2166 = vmatprep.subr.mxu0 0.0
        %2167 = vmatpush1.msra.mxu0 %v768
        %2168 = vmatprep.subr.mxu0 0.0
        %2169 = vmatpush1.msra.mxu0 %v769
        %2170 = vmatprep.subr.mxu0 0.0
        %2171 = vmatpush1.msra.mxu0 %v770
        %2172 = vmatprep.subr.mxu0 0.0
        %2173 = vmatpush1.msra.mxu0 %v771
        %2174 = vmatprep.subr.mxu0 0.0
        %2175 = vmatpush1.msra.mxu0 %v772
        %2176 = vmatprep.subr.mxu0 0.0
        %2177 = vmatpush1.msra.mxu0 %v773
        %2178 = vmatprep.subr.mxu0 0.0
        %2179 = vmatpush1.msra.mxu0 %v774
        %2180 = vmatprep.subr.mxu0 0.0
        %2181 = vmatpush1.msra.mxu0 %v775
        %2182 = vmatprep.subr.mxu0 0.0
        %2183 = vmatpush1.msra.mxu0 %v776
        %2184 = vmatprep.subr.mxu0 0.0
        %2185 = vmatpush1.msra.mxu0 %v777
        %2186 = vmatprep.subr.mxu0 0.0
        %2187 = vmatpush1.msra.mxu0 %v778
        %2188 = vmatprep.subr.mxu0 0.0
        %2189 = vmatpush1.msra.mxu0 0.0
        %2190 = vmatprep.subr.mxu0 0.0
        %2191 = vmatpush1.msra.mxu0 0.0
        %2192 = vmatprep.subr.mxu0 0.0
        %2193 = vmatpush1.msra.mxu0 0.0
        %2194 = vmatprep.subr.mxu0 0.0
        %2195 = vmatpush1.msra.mxu0 0.0
        %2196 = vmatprep.subr.mxu0 0.0
        %2197 = vmatpush1.msra.mxu0 0.0
        %2198 = vmatprep.subr.mxu0 0.0
        %2199 = vmatpush1.msra.mxu0 0.0
        %2200 = vmatprep.subr.mxu0 0.0
        %2201 = vmatpush1.msra.mxu0 0.0
        %2202 = vmatprep.subr.mxu0 0.0
        %2203 = vmatpush1.msra.mxu0 0.0
        %2204 = vmatprep.subr.mxu0 0.0
        %2205 = vmatpush1.msra.mxu0 0.0
        %2206 = vmatprep.subr.mxu0 0.0
        %2207 = vmatpush1.msra.mxu0 0.0
        %2208 = vmatprep.subr.mxu0 0.0
        %2209 = vmatpush1.msra.mxu0 0.0
        %2210 = vmatprep.subr.mxu0 0.0
        %2211 = vmatpush1.msra.mxu0 0.0
        %2212 = vmatprep.subr.mxu0 0.0
        %2213 = vmatpush1.msra.mxu0 0.0
        %2214 = vmatprep.subr.mxu0 0.0
        %2215 = vmatpush1.msra.mxu0 0.0
        %2216 = vmatprep.subr.mxu0 0.0
        %2217 = vmatpush1.msra.mxu0 0.0
        %2218 = vmatprep.subr.mxu0 0.0
        %2219 = vmatpush1.msra.mxu0 0.0
        %2220 = vmatprep.mubr.f32.mxu0 0.0
        %2221 = vmatmul.mubr.f32.gmra.mrb[0].mxu0 %v2152
        %v2222 = vpop.f32.mrb[0].mxu0
        %v2223 = vadd.f32 0.0, %v2222
        %v2224 = vpop.f32.mrb[0].mxu0
        %2225 = vmatprep.mubr.f32.mxu0 0.0
        %2226 = vmatmul.mubr.f32.gmra.mrb[0].mxu0 %v2153
        %v2227 = vpop.f32.mrb[0].mxu0
        %v2228 = vadd.f32 0.0, %v2227
        %v2229 = vpop.f32.mrb[0].mxu0
        %2230 = vmatprep.mubr.f32.mxu0 0.0
        %2231 = vmatmul.mubr.f32.gmra.mrb[0].mxu0 %v2154
        %v2232 = vpop.f32.mrb[0].mxu0
        %v2233 = vadd.f32 0.0, %v2232
        %v2234 = vpop.f32.mrb[0].mxu0
        %2235 = vmatprep.mubr.f32.mxu0 0.0
        %2236 = vmatmul.mubr.f32.gmra.mrb[0].mxu0 %v2155
        %v2237 = vpop.f32.mrb[0].mxu0
        %v2238 = vadd.f32 0.0, %v2237
        %v2239 = vpop.f32.mrb[0].mxu0
        %2240 = vdwg.mxu0
        %v2241 = vadd.f32 %v1989, %v2223
        %v2242 = vadd.f32 %v1994, %v2228
        %v2243 = vadd.f32 %v1999, %v2233
        %v2244 = vadd.f32 %v2004, %v2238
        %v2245 = vadd.f32 %v2241, %v1503
        %v2246 = vadd.f32 %v2242, %v1503
        %v2247 = vadd.f32 %v2243, %v1503
        %v2248 = vadd.f32 %v2244, %v1503
        %v2249 = vmul.f32 %v662, %v2245
        %v2250 = vmul.f32 %v667, %v2246
        %v2251 = vmul.f32 %v672, %v2247
        %v2252 = vmul.f32 %v677, %v2248
        %vm2253 = vcmp.gt.f32.partialorder %v2249, 0.0
        %vm2254 = vcmp.gt.f32.partialorder %v2250, 0.0
        %vm2255 = vcmp.gt.f32.partialorder %v2251, 0.0
        %vm2256 = vcmp.gt.f32.partialorder %v2252, 0.0
        %v2257 = vmin.f32 %v2249, 0.0
        %v2258 = vmin.f32 %v2250, 0.0
        %v2259 = vmin.f32 %v2251, 0.0
        %v2260 = vmin.f32 %v2252, 0.0
        %v2261 = vmul.f32 %v2257, 1.442695
        %v2262 = vpow.pop %v2261
        %v2263 = vmul.f32 %v2258, 1.442695
        %v2264 = vpow.pop %v2263
        %v2265 = vmul.f32 %v2259, 1.442695
        %v2266 = vpow.pop %v2265
        %v2267 = vmul.f32 %v2260, 1.442695
        %v2268 = vpow.pop %v2267
        %v2269 = vsub.f32 %v2262, 1.0
        %v2270 = vsub.f32 %v2264, 1.0
        %v2271 = vsub.f32 %v2266, 1.0
        %v2272 = vsub.f32 %v2268, 1.0
        %v2273 = vsel %vm2253, %v2249, %v2269
        %v2274 = vsel %vm2254, %v2250, %v2270
        %v2275 = vsel %vm2255, %v2251, %v2271
        %v2276 = vsel %vm2256, %v2252, %v2272
        %v2277 = vmul.f32 %v2273, %v2120
        %v2278 = vmul.f32 %v2274, %v2121
        %v2279 = vmul.f32 %v2275, %v2122
        %v2280 = vmul.f32 %v2276, %v2123
        %v2281 = vsub.f32 1.0, %v2120
        %v2282 = vsub.f32 1.0, %v2121
        %v2283 = vsub.f32 1.0, %v2122
        %v2284 = vsub.f32 1.0, %v2123
        %v2285 = vmul.f32 %v1549, %v2281
        %v2286 = vmul.f32 %v1550, %v2282
        %v2287 = vmul.f32 %v1551, %v2283
        %v2288 = vmul.f32 %v1552, %v2284
        %v2289 = vadd.f32 %v2277, %v2285
        %v2290 = vadd.f32 %v2278, %v2286
        %v2291 = vadd.f32 %v2279, %v2287
        %v2292 = vadd.f32 %v2280, %v2288
        %2293 = vst [vmem:[%s510] sm:$0xff] %v2289
        %2294 = vst [vmem:[%s510 + $0x8] sm:$0xff] %v2290
        %2295 = vst [vmem:[%s510 + $0x10] sm:$0xff] %v2291
        %2296 = vst [vmem:[%s510 + $0x18] sm:$0xff] %v2292
        %s2297 = sand.u32 %s244, 1
        %s2298 = scalar_lea.sflag [#allocation4], %s2297
        %s2299 = sand.u32 %s244, 1
        %s2300 = smul.addr %s2299, 32
        %s2301 = scalar_lea.vmem [#allocation17], %s2300
        // Predicated region
        $region93: #{tpu_custom_call.1} parent=55 // pred_check
          %p2302 = pneg %p254
        $region94: #{tpu_custom_call.1} parent=55 // pred_check_branch
          %2304 = sbr.rel (%p2302) target = $region96
        $region95: #{tpu_custom_call.1} parent=55 // pred_region
          %s2305 = smul.u32 4, %s32
          %s2307 = ssub.s32 512, 512
          %2308 = vsyncadd %s2298, %s2307
          %s2309 = smul.addr %s2305, 128
          %s2310 = scalar_lea.hbm %s9, %s2309
          %s2311 = sshll.u32 %s2301, 4
          %s2312 = int_to_ptr.vmem [resolvable:$true] %s2311
          %2317 = dma.vmem_to_hbm [thread:$0]  %s2312, 512, %s2310, %s2298, 128, 128, 8
        $region96: #{tpu_custom_call.1} parent=55 // pred_fallthru
          _
      $region56: #{tpu_custom_call.1} parent=5 // pred_fallthru
        _
      %p2318 = scmp.le.s32.totalorder 2, %s27
      // Predicated region
      $region97: #{tpu_custom_call.1} parent=5 // pred_check
        %p2319 = pneg %p2318
      $region98: #{tpu_custom_call.1} parent=5 // pred_check_branch
        %2321 = sbr.rel (%p2319) target = $region100
      $region99: #{tpu_custom_call.1} parent=5 // pred_region
        %s2322 = ssub.s32 %s27, 2
        // Predicated region
        $region101: #{tpu_custom_call.1} parent=99 // pred_check
          %p2323 = pneg %p260
        $region102: #{tpu_custom_call.1} parent=99 // pred_check_branch
          %2325 = sbr.rel (%p2323) target = $region104
        $region103: #{tpu_custom_call.1} parent=99 // pred_region
          %s2326 = sand.u32 %s245, 1
          %s2327 = scalar_lea.sflag [#allocation4], %s2326
          %s2328 = sand.u32 %s245, 1
          %s2329 = smul.addr %s2328, 32
          %s2330 = scalar_lea.vmem [#allocation17], %s2329
          %2331 = dma.done %s2327, 512
        $region104: #{tpu_custom_call.1} parent=99 // pred_fallthru
          _
      $region100: #{tpu_custom_call.1} parent=5 // pred_fallthru
        _
    $region6: #{tpu_custom_call.1} parent=1 // loop_footer
      %s31 = sadd.s32 1, %s27
    $region7: #{tpu_custom_call.1} parent=1 // loop_footer_branch
      %26 = sbr.rel target = $region3
    $region8: #{tpu_custom_call.1} parent=1 // loop_exit
      _
    %2332 = vsyncpa [#allocation3], 1
    %s2333 = scalar_lea.sflag [#allocation3], 1
    %2334 = vsyncpa %s2333, 1
    %2335 = vsyncpa [#allocation6], 1
    %s2336 = scalar_lea.sflag [#allocation6], 1
    %2337 = vsyncpa %s2336, 1
    %2338 = vsyncpa [#allocation9], 1
    %2339 = vsyncpa [#allocation12], 1
    %2340 = vsyncpa [#allocation15], 1
    %2341 = vsyncpa [#allocation4], 1
    %s2342 = scalar_lea.sflag [#allocation4], 1
    %2343 = vsyncpa %s2342, 1

</llo_original>
